<compile_context>
chip_gen: v5e
topology: v5e:2x2
jax: 0.10.0
libtpu: 0.0.40
codegen_flags: <defaults>
</compile_context>

<pallas_src>
import math

import jax
import jax.numpy as jnp
from jax.experimental import pallas as pl
from jax.experimental.pallas import tpu as pltpu

# ---- problem sizes (small, consistent with the module's forward) -----------
S = 8            # sequence length (sliding-window entries)
B = 2            # batch size (number of windows)
D = 32           # d_model
H = 4            # nhead
HD = D // H      # head dim
DFF = 64         # feed-forward hidden dim
NUM_LAYERS = 2
EPS = 1e-5       # LayerNorm eps (PyTorch default)
N = S * B        # flattened token count; row = s * B + b (seq-major order)
NEG = -1e30      # additive mask value

# The in-kernel cross-batch mask uses bitwise batch-id extraction.
# TODO(synk): switch to integer remainder if B is ever not a power of two.
assert B & (B - 1) == 0, "B must be a power of two for the bitwise batch mask"


def _layer_norm(x, gamma, beta):
    mean = jnp.mean(x, axis=-1, keepdims=True)
    var = jnp.mean((x - mean) ** 2, axis=-1, keepdims=True)
    return (x - mean) * jax.lax.rsqrt(var + EPS) * gamma + beta


# ---- fused kernel: all layers + whole batch in one invocation ---------------
def fused_decoder_kernel(
    x_ref, pos_ref, maskf_ref,
    w_in_ref, b_in_ref, w_mid_ref, b_mid_ref, w2_ref, vec_ref,
    out_ref, attn_ref,
    ctx_ref,
):
    x = x_ref[...]              # (N, D) activation, carried across layers
    pos = pos_ref[...]          # (N, D)

    # Additive attention mask (N, N):
    #   -1e30 where query and key belong to different batch elements
    #   -1e30 on padded keys (built here from the 0/1 float key-padding mask).
    row_i = jax.lax.broadcasted_iota(jnp.int32, (N, N), 0)
    col_j = jax.lax.broadcasted_iota(jnp.int32, (N, N), 1)
    same_batch = (row_i & (B - 1)) == (col_j & (B - 1))
    addmask = jnp.where(same_batch, 0.0, NEG).astype(jnp.float32)
    addmask = addmask + maskf_ref[...] * jnp.float32(NEG)      # (N,N) + (1,N)

    scale = jnp.float32(1.0 / math.sqrt(HD))
    inv_h = jnp.float32(1.0 / H)

    for l in range(NUM_LAYERS):          # static unroll over layers
        w_in = w_in_ref[l]               # (D, 3D)    [Wq | Wk | Wv]
        b_in = b_in_ref[l]               # (1, 3D)    [bq | bk | bv]
        w_mid = w_mid_ref[l]             # (D, D+DFF) [Wo | W1]
        b_mid = b_mid_ref[l]             # (1, D+DFF) [bo | b1]
        w2 = w2_ref[l]                   # (DFF, D)
        vec = vec_ref[l]                 # (5, D) [ln1_g, ln1_b, b2, ln2_g, ln2_b]

        qk_in = x + pos
        qk = jnp.dot(qk_in, w_in[:, : 2 * D],
                     preferred_element_type=jnp.float32) + b_in[:, : 2 * D]
        v = jnp.dot(x, w_in[:, 2 * D:],
                    preferred_element_type=jnp.float32) + b_in[:, 2 * D:]
        q = qk[:, :D] * scale
        k = qk[:, D:]

        attn_avg = jnp.zeros((N, N), jnp.float32)
        for h in range(H):               # static unroll over heads
            sl = slice(h * HD, (h + 1) * HD)
            qh = q[:, sl]
            kh = k[:, sl]
            vh = v[:, sl]
            # q @ k^T without materializing a transpose (NT contraction).
            s = jax.lax.dot_general(qh, kh, (((1,), (1,)), ((), ())),
                                    preferred_element_type=jnp.float32)
            s = s + addmask
            s = s - jnp.max(s, axis=-1, keepdims=True)
            e = jnp.exp(s)
            p = e * pl.reciprocal(jnp.sum(e, axis=-1, keepdims=True), approx=True)
            attn_avg = attn_avg + p
            # write this head's context into its lane slice (no concatenate)
            ctx_ref[:, sl] = jnp.dot(p, vh, preferred_element_type=jnp.float32)
        attn_ref[l] = attn_avg * inv_h   # head-averaged weights for this layer

        ctx = ctx_ref[...]
        attn_out = jnp.dot(ctx, w_mid[:, :D],
                           preferred_element_type=jnp.float32) + b_mid[:, :D]
        # residual + norm1 (dropout == identity in eval mode)
        t = _layer_norm(x + attn_out, vec[0:1, :], vec[1:2, :])
        # feed-forward + residual + norm2
        hdn = jnp.maximum(
            jnp.dot(t, w_mid[:, D:], preferred_element_type=jnp.float32)
            + b_mid[:, D:], 0.0)
        ff = jnp.dot(hdn, w2, preferred_element_type=jnp.float32) + vec[2:3, :]
        x = _layer_norm(t + ff, vec[3:4, :], vec[4:5, :])

    out_ref[...] = x


def _full_spec(shape):
    n = len(shape)
    return pl.BlockSpec(shape, lambda i, _n=n: (0,) * _n)


def _run_fused_decoder(x_flat, pos_flat, mask_f, packed):
    w_in, b_in, w_mid, b_mid, w2, vec = packed
    grid_spec = pltpu.PrefetchScalarGridSpec(
        num_scalar_prefetch=0,
        grid=(1,),
        in_specs=[
            _full_spec((N, D)),            # x (flattened seq-first input)
            _full_spec((N, D)),            # pos
            _full_spec((1, N)),            # key-padding mask (0/1 float)
            _full_spec(w_in.shape), _full_spec(b_in.shape),
            _full_spec(w_mid.shape), _full_spec(b_mid.shape),
            _full_spec(w2.shape), _full_spec(vec.shape),
        ],
        out_specs=[
            _full_spec((N, D)),
            _full_spec((NUM_LAYERS, N, N)),
        ],
        scratch_shapes=[pltpu.VMEM((N, D), jnp.float32)],   # per-layer ctx slab
    )
    return pl.pallas_call(
        fused_decoder_kernel,
        grid_spec=grid_spec,
        out_shape=[
            jax.ShapeDtypeStruct((N, D), jnp.float32),
            jax.ShapeDtypeStruct((NUM_LAYERS, N, N), jnp.float32),
        ],
        compiler_params=pltpu.CompilerParams(
            dimension_semantics=("arbitrary",)),
    )(x_flat, pos_flat, mask_f, w_in, b_in, w_mid, b_mid, w2, vec)


@jax.jit
def transformer_decoder(global_input, tgt_key_padding_mask, position_embed,
                        packed_params):
    """Mirrors TransformerDecoder.forward.

    global_input, position_embed: [S, B, D] (PyTorch seq-first)
    tgt_key_padding_mask: [B, S] bool (True = padded key)
    packed_params: 6 stacked parameter arrays (see pack_params)
    Returns (output [S, B, D], weights [num_layers, B, S, S]) or (output, None).
    """
    if NUM_LAYERS == 0:
        return global_input.astype(jnp.float32), None

    # Free row-major collapses (no transposes): row = s * B + b.
    x_flat = global_input.astype(jnp.float32).reshape(N, D)
    pos_flat = position_embed.astype(jnp.float32).reshape(N, D)
    # 0/1 float key-padding mask in flat key order; additive form built in-kernel.
    mask_f = tgt_key_padding_mask.astype(jnp.float32).T.reshape(1, N)

    out_flat, attn_full = _run_fused_decoder(x_flat, pos_flat, mask_f,
                                             packed_params)

    output = out_flat.reshape(S, B, D)
    # Pull each batch's (S, S) attention map off the flattened (N, N) weights.
    a5 = attn_full.reshape(NUM_LAYERS, S, B, S, B)
    weights = jnp.transpose(jnp.diagonal(a5, axis1=2, axis2=4), (0, 3, 1, 2))
    return output, weights


# ---- deterministic parameter construction (mirrors one decoder layer) -------
def init_layer_params(key):
    keys = jax.random.split(key, 12)

    def rn(k, shape, scale):
        return jax.random.normal(k, shape, jnp.float32) * scale

    s_attn = 1.0 / math.sqrt(D)
    wq_t = rn(keys[0], (D, D), s_attn)      # already transposed: y = x @ W_t
    wk_t = rn(keys[1], (D, D), s_attn)
    wv_t = rn(keys[2], (D, D), s_attn)
    bq = rn(keys[3], (1, D), 0.02)
    bk = rn(keys[4], (1, D), 0.02)
    bv = rn(keys[5], (1, D), 0.02)
    wo_t = rn(keys[6], (D, D), s_attn)
    bo = rn(keys[7], (1, D), 0.02)
    ln1_g = jnp.ones((1, D), jnp.float32)
    ln1_b = jnp.zeros((1, D), jnp.float32)
    w1_t = rn(keys[8], (D, DFF), 1.0 / math.sqrt(D))
    b1 = rn(keys[9], (1, DFF), 0.02)
    w2_t = rn(keys[10], (DFF, D), 1.0 / math.sqrt(DFF))
    b2 = rn(keys[11], (1, D), 0.02)
    ln2_g = jnp.ones((1, D), jnp.float32)
    ln2_b = jnp.zeros((1, D), jnp.float32)
    return (wq_t, wk_t, wv_t, bq, bk, bv, wo_t, bo,
            ln1_g, ln1_b, w1_t, b1, w2_t, b2, ln2_g, ln2_b)


def pack_params(params_per_layer):
    """Coalesce the 16 per-layer tensors into 6 stacked, kernel-friendly arrays."""
    def cat_last(idx):
        return jnp.stack(
            [jnp.concatenate([p[i] for i in idx], axis=-1) for p in params_per_layer])

    w_in = cat_last((0, 1, 2))       # (L, D, 3D)     [Wq | Wk | Wv]
    b_in = cat_last((3, 4, 5))       # (L, 1, 3D)     [bq | bk | bv]
    w_mid = cat_last((6, 10))        # (L, D, D+DFF)  [Wo | W1]
    b_mid = cat_last((7, 11))        # (L, 1, D+DFF)  [bo | b1]
    w2 = jnp.stack([p[12] for p in params_per_layer])              # (L, DFF, D)
    vec = jnp.stack(                                               # (L, 5, D)
        [jnp.concatenate([p[8], p[9], p[13], p[14], p[15]], axis=0)
         for p in params_per_layer])
    return (w_in, b_in, w_mid, b_mid, w2, vec)


# ---- pure-JAX reference (for a sanity check) --------------------------------
def _reference_layer(x, pos, mask_bool, p):
    (wq, wk, wv, bq, bk, bv, wo, bo, g1, be1, w1, b1, w2, b2, g2, be2) = p
    qk = x + pos
    q = (qk @ wq + bq).reshape(B, S, H, HD).transpose(0, 2, 1, 3) * (1.0 / math.sqrt(HD))
    k = (qk @ wk + bk).reshape(B, S, H, HD).transpose(0, 2, 1, 3)
    v = (x @ wv + bv).reshape(B, S, H, HD).transpose(0, 2, 1, 3)
    scores = q @ k.transpose(0, 1, 3, 2)
    scores = scores + jnp.where(mask_bool, -1e30, 0.0)[:, None, None, :]
    pattn = jax.nn.softmax(scores, axis=-1)
    ctx = (pattn @ v).transpose(0, 2, 1, 3).reshape(B, S, D)
    attn_out = ctx @ wo + bo

    def ln(t, g, b):
        m = t.mean(-1, keepdims=True)
        var = ((t - m) ** 2).mean(-1, keepdims=True)
        return (t - m) / jnp.sqrt(var + EPS) * g + b

    tgt = ln(x + attn_out, g1, be1)
    ff = jnp.maximum(tgt @ w1 + b1, 0.0) @ w2 + b2
    tgt = ln(tgt + ff, g2, be2)
    return tgt, pattn.mean(axis=1)


def _reference_decoder(global_input, mask_bool, position_embed, params_per_layer):
    x = jnp.transpose(global_input, (1, 0, 2))
    pos = jnp.transpose(position_embed, (1, 0, 2))
    ws = []
    for p in params_per_layer:
        x, w = _reference_layer(x, pos, mask_bool, p)
        ws.append(w)
    return jnp.transpose(x, (1, 0, 2)), jnp.stack(ws, axis=0)


if __name__ == "__main__":
    key = jax.random.PRNGKey(0)
    k_in, k_pos, k_par = jax.random.split(key, 3)

    global_input = jax.random.normal(k_in, (S, B, D), jnp.float32)
    position_embed = jax.random.normal(k_pos, (S, B, D), jnp.float32)
    # True = padded key position (last 2 tokens of batch element 1 padded)
    tgt_key_padding_mask = jnp.zeros((B, S), jnp.bool_).at[1, S - 2:].set(True)

    # _get_clones uses copy.deepcopy -> all layers start from identical weights
    layer_params = init_layer_params(k_par)
    params_per_layer = [layer_params] * NUM_LAYERS
    packed = pack_params(params_per_layer)

    output, weights = transformer_decoder(
        global_input, tgt_key_padding_mask, position_embed, packed
    )
    jax.block_until_ready((output, weights))

    assert output.shape == (S, B, D)
    assert weights.shape == (NUM_LAYERS, B, S, S)
    assert bool(jnp.isfinite(output).all()) and bool(jnp.isfinite(weights).all())

    ref_out, ref_w = _reference_decoder(
        global_input, tgt_key_padding_mask, position_embed, params_per_layer
    )
    assert jnp.allclose(output, ref_out, atol=3e-2, rtol=3e-2)
    assert jnp.allclose(weights, ref_w, atol=3e-2, rtol=3e-2)

    print("KERNEL_OK")
</pallas_src>

<mosaic_0001>
module attributes {stable_mosaic.version = 11 : i64} {
  func.func @fused_decoder_kernel(%arg0: i32, %arg1: memref<16x32xf32, #tpu.memory_space<vmem>>, %arg2: memref<16x32xf32, #tpu.memory_space<vmem>>, %arg3: memref<1x16xf32, #tpu.memory_space<vmem>>, %arg4: memref<2x32x96xf32, #tpu.memory_space<vmem>>, %arg5: memref<2x1x96xf32, #tpu.memory_space<vmem>>, %arg6: memref<2x32x96xf32, #tpu.memory_space<vmem>>, %arg7: memref<2x1x96xf32, #tpu.memory_space<vmem>>, %arg8: memref<2x64x32xf32, #tpu.memory_space<vmem>>, %arg9: memref<2x5x32xf32, #tpu.memory_space<vmem>>, %arg10: memref<16x32xf32, #tpu.memory_space<vmem>>, %arg11: memref<2x16x16xf32, #tpu.memory_space<vmem>>, %arg12: memref<16x32xf32, #tpu.memory_space<vmem>>) attributes {dimension_semantics = [#tpu.dimension_semantics<arbitrary>], iteration_bounds = array<i64: 1>, scalar_prefetch = 0 : i64, scratch_operands = 1 : i64, tpu.core_type = #tpu.core_type<tc>, window_params = [{pipeline_mode = #tpu.pipeline_mode<synchronous>, transform_indices = @transform_0, window_bounds = array<i64: 16, 32>}, {pipeline_mode = #tpu.pipeline_mode<synchronous>, transform_indices = @transform_1, window_bounds = array<i64: 16, 32>}, {pipeline_mode = #tpu.pipeline_mode<synchronous>, transform_indices = @transform_2, window_bounds = array<i64: 1, 16>}, {pipeline_mode = #tpu.pipeline_mode<synchronous>, transform_indices = @transform_3, window_bounds = array<i64: 2, 32, 96>}, {pipeline_mode = #tpu.pipeline_mode<synchronous>, transform_indices = @transform_4, window_bounds = array<i64: 2, 1, 96>}, {pipeline_mode = #tpu.pipeline_mode<synchronous>, transform_indices = @transform_5, window_bounds = array<i64: 2, 32, 96>}, {pipeline_mode = #tpu.pipeline_mode<synchronous>, transform_indices = @transform_6, window_bounds = array<i64: 2, 1, 96>}, {pipeline_mode = #tpu.pipeline_mode<synchronous>, transform_indices = @transform_7, window_bounds = array<i64: 2, 64, 32>}, {pipeline_mode = #tpu.pipeline_mode<synchronous>, transform_indices = @transform_8, window_bounds = array<i64: 2, 5, 32>}, {pipeline_mode = #tpu.pipeline_mode<synchronous>, transform_indices = @transform_9, window_bounds = array<i64: 16, 32>}, {pipeline_mode = #tpu.pipeline_mode<synchronous>, transform_indices = @transform_10, window_bounds = array<i64: 2, 16, 16>}]} {
    %c0 = arith.constant 0 : index
    %c0_0 = arith.constant 0 : index
    %0 = vector.load %arg1[%c0, %c0_0] : memref<16x32xf32, #tpu.memory_space<vmem>>, vector<16x32xf32>
    %c0_1 = arith.constant 0 : index
    %c0_2 = arith.constant 0 : index
    %1 = vector.load %arg2[%c0_1, %c0_2] : memref<16x32xf32, #tpu.memory_space<vmem>>, vector<16x32xf32>
    %2 = tpu.iota {dimensions = array<i32: 0>} : vector<16x16xi32>
    %3 = tpu.iota {dimensions = array<i32: 1>} : vector<16x16xi32>
    %c1_i32 = arith.constant 1 : i32
    %4 = vector.broadcast %c1_i32 : i32 to vector<16x16xi32>
    %5 = arith.andi %2, %4 : vector<16x16xi32>
    %c1_i32_3 = arith.constant 1 : i32
    %6 = vector.broadcast %c1_i32_3 : i32 to vector<16x16xi32>
    %7 = arith.andi %3, %6 : vector<16x16xi32>
    %8 = arith.cmpi eq, %5, %7 : vector<16x16xi32>
    %cst = arith.constant 0.000000e+00 : f32
    %cst_4 = arith.constant -1.000000e+30 : f32
    %9 = vector.broadcast %cst : f32 to vector<16x16xf32>
    %10 = vector.broadcast %cst_4 : f32 to vector<16x16xf32>
    %11 = arith.select %8, %9, %10 : vector<16x16xi1>, vector<16x16xf32>
    %c0_5 = arith.constant 0 : index
    %c0_6 = arith.constant 0 : index
    %12 = vector.load %arg3[%c0_5, %c0_6] : memref<1x16xf32, #tpu.memory_space<vmem>>, vector<1x16xf32>
    %cst_7 = arith.constant -1.000000e+30 : f32
    %13 = vector.broadcast %cst_7 : f32 to vector<1x16xf32>
    %14 = arith.mulf %12, %13 : vector<1x16xf32>
    %15 = vector.broadcast %14 : vector<1x16xf32> to vector<16x16xf32>
    %16 = arith.addf %11, %15 : vector<16x16xf32>
    %c0_8 = arith.constant 0 : index
    %c0_9 = arith.constant 0 : index
    %c0_10 = arith.constant 0 : index
    %17 = vector.load %arg4[%c0_8, %c0_9, %c0_10] : memref<2x32x96xf32, #tpu.memory_space<vmem>>, vector<1x32x96xf32>
    %18 = vector.shape_cast %17 : vector<1x32x96xf32> to vector<32x96xf32>
    %c0_11 = arith.constant 0 : index
    %c0_12 = arith.constant 0 : index
    %c0_13 = arith.constant 0 : index
    %19 = vector.load %arg5[%c0_11, %c0_12, %c0_13] : memref<2x1x96xf32, #tpu.memory_space<vmem>>, vector<1x1x96xf32>
    %20 = vector.shape_cast %19 : vector<1x1x96xf32> to vector<1x96xf32>
    %c0_14 = arith.constant 0 : index
    %c0_15 = arith.constant 0 : index
    %c0_16 = arith.constant 0 : index
    %21 = vector.load %arg6[%c0_14, %c0_15, %c0_16] : memref<2x32x96xf32, #tpu.memory_space<vmem>>, vector<1x32x96xf32>
    %22 = vector.shape_cast %21 : vector<1x32x96xf32> to vector<32x96xf32>
    %c0_17 = arith.constant 0 : index
    %c0_18 = arith.constant 0 : index
    %c0_19 = arith.constant 0 : index
    %23 = vector.load %arg7[%c0_17, %c0_18, %c0_19] : memref<2x1x96xf32, #tpu.memory_space<vmem>>, vector<1x1x96xf32>
    %24 = vector.shape_cast %23 : vector<1x1x96xf32> to vector<1x96xf32>
    %c0_20 = arith.constant 0 : index
    %c0_21 = arith.constant 0 : index
    %c0_22 = arith.constant 0 : index
    %25 = vector.load %arg8[%c0_20, %c0_21, %c0_22] : memref<2x64x32xf32, #tpu.memory_space<vmem>>, vector<1x64x32xf32>
    %26 = vector.shape_cast %25 : vector<1x64x32xf32> to vector<64x32xf32>
    %c0_23 = arith.constant 0 : index
    %c0_24 = arith.constant 0 : index
    %c0_25 = arith.constant 0 : index
    %27 = vector.load %arg9[%c0_23, %c0_24, %c0_25] : memref<2x5x32xf32, #tpu.memory_space<vmem>>, vector<1x5x32xf32>
    %28 = vector.shape_cast %27 : vector<1x5x32xf32> to vector<5x32xf32>
    %29 = arith.addf %0, %1 : vector<16x32xf32>
    %30 = vector.extract_strided_slice %18 {offsets = [0, 0], sizes = [32, 64], strides = [1, 1]} : vector<32x96xf32> to vector<32x64xf32>
    %cst_26 = arith.constant dense<0.000000e+00> : vector<16x64xf32>
    %31 = tpu.matmul %29, %30, %cst_26 {dimension_numbers = #tpu.dot_dimension_numbers<[1], [0], [0], [1], [0, 0, 1, 1], [], []>} : vector<16x32xf32>, vector<32x64xf32>, vector<16x64xf32> -> vector<16x64xf32>
    %32 = vector.extract_strided_slice %20 {offsets = [0, 0], sizes = [1, 64], strides = [1, 1]} : vector<1x96xf32> to vector<1x64xf32>
    %33 = vector.broadcast %32 : vector<1x64xf32> to vector<16x64xf32>
    %34 = arith.addf %31, %33 : vector<16x64xf32>
    %35 = vector.extract_strided_slice %18 {offsets = [0, 64], sizes = [32, 32], strides = [1, 1]} : vector<32x96xf32> to vector<32x32xf32>
    %cst_27 = arith.constant dense<0.000000e+00> : vector<16x32xf32>
    %36 = tpu.matmul %0, %35, %cst_27 {dimension_numbers = #tpu.dot_dimension_numbers<[1], [0], [0], [1], [0, 0, 1, 1], [], []>} : vector<16x32xf32>, vector<32x32xf32>, vector<16x32xf32> -> vector<16x32xf32>
    %37 = vector.extract_strided_slice %20 {offsets = [0, 64], sizes = [1, 32], strides = [1, 1]} : vector<1x96xf32> to vector<1x32xf32>
    %38 = vector.broadcast %37 : vector<1x32xf32> to vector<16x32xf32>
    %39 = arith.addf %36, %38 : vector<16x32xf32>
    %40 = vector.extract_strided_slice %34 {offsets = [0, 0], sizes = [16, 32], strides = [1, 1]} : vector<16x64xf32> to vector<16x32xf32>
    %cst_28 = arith.constant 0.353553385 : f32
    %41 = vector.broadcast %cst_28 : f32 to vector<16x32xf32>
    %42 = arith.mulf %40, %41 : vector<16x32xf32>
    %43 = vector.extract_strided_slice %34 {offsets = [0, 32], sizes = [16, 32], strides = [1, 1]} : vector<16x64xf32> to vector<16x32xf32>
    %cst_29 = arith.constant 0.000000e+00 : f32
    %44 = vector.broadcast %cst_29 : f32 to vector<16x16xf32>
    %45 = vector.extract_strided_slice %42 {offsets = [0, 0], sizes = [16, 8], strides = [1, 1]} : vector<16x32xf32> to vector<16x8xf32>
    %46 = vector.extract_strided_slice %43 {offsets = [0, 0], sizes = [16, 8], strides = [1, 1]} : vector<16x32xf32> to vector<16x8xf32>
    %47 = vector.extract_strided_slice %39 {offsets = [0, 0], sizes = [16, 8], strides = [1, 1]} : vector<16x32xf32> to vector<16x8xf32>
    %cst_30 = arith.constant dense<0.000000e+00> : vector<16x16xf32>
    %48 = tpu.matmul %45, %46, %cst_30 {dimension_numbers = #tpu.dot_dimension_numbers<[1], [1], [0], [0], [0, 0, 1, 0], [], []>} : vector<16x8xf32>, vector<16x8xf32>, vector<16x16xf32> -> vector<16x16xf32>
    %49 = arith.addf %48, %16 : vector<16x16xf32>
    %cst_31 = arith.constant dense<0xFF800000> : vector<16xf32>
    %50 = vector.multi_reduction <maximumf>, %49, %cst_31 [1] : vector<16x16xf32> to vector<16xf32>
    %51 = vector.shape_cast %50 : vector<16xf32> to vector<16x1xf32>
    %52 = vector.broadcast %51 : vector<16x1xf32> to vector<16x16xf32>
    %53 = arith.subf %49, %52 : vector<16x16xf32>
    %54 = math.exp %53 : vector<16x16xf32>
    %cst_32 = arith.constant dense<0.000000e+00> : vector<16xf32>
    %55 = vector.multi_reduction <add>, %54, %cst_32 [1] : vector<16x16xf32> to vector<16xf32>
    %56 = vector.shape_cast %55 : vector<16xf32> to vector<16x1xf32>
    %57 = tpu.reciprocal %56 {approx = true} : vector<16x1xf32> -> vector<16x1xf32>
    %58 = vector.broadcast %57 : vector<16x1xf32> to vector<16x16xf32>
    %59 = arith.mulf %54, %58 : vector<16x16xf32>
    %60 = arith.addf %44, %59 : vector<16x16xf32>
    %cst_33 = arith.constant dense<0.000000e+00> : vector<16x8xf32>
    %61 = tpu.matmul %59, %47, %cst_33 {dimension_numbers = #tpu.dot_dimension_numbers<[1], [0], [0], [1], [0, 0, 1, 1], [], []>} : vector<16x16xf32>, vector<16x8xf32>, vector<16x8xf32> -> vector<16x8xf32>
    %c0_34 = arith.constant 0 : index
    %c0_35 = arith.constant 0 : index
    %62 = vector.load %arg12[%c0_34, %c0_35] : memref<16x32xf32, #tpu.memory_space<vmem>>, vector<16x8xf32>
    tpu.vector_store %arg12[%c0_34, %c0_35], %61 {strides = array<i32>} : memref<16x32xf32, #tpu.memory_space<vmem>>, vector<16x8xf32>,
    %63 = vector.extract_strided_slice %42 {offsets = [0, 8], sizes = [16, 8], strides = [1, 1]} : vector<16x32xf32> to vector<16x8xf32>
    %64 = vector.extract_strided_slice %43 {offsets = [0, 8], sizes = [16, 8], strides = [1, 1]} : vector<16x32xf32> to vector<16x8xf32>
    %65 = vector.extract_strided_slice %39 {offsets = [0, 8], sizes = [16, 8], strides = [1, 1]} : vector<16x32xf32> to vector<16x8xf32>
    %cst_36 = arith.constant dense<0.000000e+00> : vector<16x16xf32>
    %66 = tpu.matmul %63, %64, %cst_36 {dimension_numbers = #tpu.dot_dimension_numbers<[1], [1], [0], [0], [0, 0, 1, 0], [], []>} : vector<16x8xf32>, vector<16x8xf32>, vector<16x16xf32> -> vector<16x16xf32>
    %67 = arith.addf %66, %16 : vector<16x16xf32>
    %cst_37 = arith.constant dense<0xFF800000> : vector<16xf32>
    %68 = vector.multi_reduction <maximumf>, %67, %cst_37 [1] : vector<16x16xf32> to vector<16xf32>
    %69 = vector.shape_cast %68 : vector<16xf32> to vector<16x1xf32>
    %70 = vector.broadcast %69 : vector<16x1xf32> to vector<16x16xf32>
    %71 = arith.subf %67, %70 : vector<16x16xf32>
    %72 = math.exp %71 : vector<16x16xf32>
    %cst_38 = arith.constant dense<0.000000e+00> : vector<16xf32>
    %73 = vector.multi_reduction <add>, %72, %cst_38 [1] : vector<16x16xf32> to vector<16xf32>
    %74 = vector.shape_cast %73 : vector<16xf32> to vector<16x1xf32>
    %75 = tpu.reciprocal %74 {approx = true} : vector<16x1xf32> -> vector<16x1xf32>
    %76 = vector.broadcast %75 : vector<16x1xf32> to vector<16x16xf32>
    %77 = arith.mulf %72, %76 : vector<16x16xf32>
    %78 = arith.addf %60, %77 : vector<16x16xf32>
    %cst_39 = arith.constant dense<0.000000e+00> : vector<16x8xf32>
    %79 = tpu.matmul %77, %65, %cst_39 {dimension_numbers = #tpu.dot_dimension_numbers<[1], [0], [0], [1], [0, 0, 1, 1], [], []>} : vector<16x16xf32>, vector<16x8xf32>, vector<16x8xf32> -> vector<16x8xf32>
    %c0_40 = arith.constant 0 : index
    %c8 = arith.constant 8 : index
    %80 = vector.load %arg12[%c0_40, %c8] : memref<16x32xf32, #tpu.memory_space<vmem>>, vector<16x8xf32>
    tpu.vector_store %arg12[%c0_40, %c8], %79 {strides = array<i32>} : memref<16x32xf32, #tpu.memory_space<vmem>>, vector<16x8xf32>,
    %81 = vector.extract_strided_slice %42 {offsets = [0, 16], sizes = [16, 8], strides = [1, 1]} : vector<16x32xf32> to vector<16x8xf32>
    %82 = vector.extract_strided_slice %43 {offsets = [0, 16], sizes = [16, 8], strides = [1, 1]} : vector<16x32xf32> to vector<16x8xf32>
    %83 = vector.extract_strided_slice %39 {offsets = [0, 16], sizes = [16, 8], strides = [1, 1]} : vector<16x32xf32> to vector<16x8xf32>
    %cst_41 = arith.constant dense<0.000000e+00> : vector<16x16xf32>
    %84 = tpu.matmul %81, %82, %cst_41 {dimension_numbers = #tpu.dot_dimension_numbers<[1], [1], [0], [0], [0, 0, 1, 0], [], []>} : vector<16x8xf32>, vector<16x8xf32>, vector<16x16xf32> -> vector<16x16xf32>
    %85 = arith.addf %84, %16 : vector<16x16xf32>
    %cst_42 = arith.constant dense<0xFF800000> : vector<16xf32>
    %86 = vector.multi_reduction <maximumf>, %85, %cst_42 [1] : vector<16x16xf32> to vector<16xf32>
    %87 = vector.shape_cast %86 : vector<16xf32> to vector<16x1xf32>
    %88 = vector.broadcast %87 : vector<16x1xf32> to vector<16x16xf32>
    %89 = arith.subf %85, %88 : vector<16x16xf32>
    %90 = math.exp %89 : vector<16x16xf32>
    %cst_43 = arith.constant dense<0.000000e+00> : vector<16xf32>
    %91 = vector.multi_reduction <add>, %90, %cst_43 [1] : vector<16x16xf32> to vector<16xf32>
    %92 = vector.shape_cast %91 : vector<16xf32> to vector<16x1xf32>
    %93 = tpu.reciprocal %92 {approx = true} : vector<16x1xf32> -> vector<16x1xf32>
    %94 = vector.broadcast %93 : vector<16x1xf32> to vector<16x16xf32>
    %95 = arith.mulf %90, %94 : vector<16x16xf32>
    %96 = arith.addf %78, %95 : vector<16x16xf32>
    %cst_44 = arith.constant dense<0.000000e+00> : vector<16x8xf32>
    %97 = tpu.matmul %95, %83, %cst_44 {dimension_numbers = #tpu.dot_dimension_numbers<[1], [0], [0], [1], [0, 0, 1, 1], [], []>} : vector<16x16xf32>, vector<16x8xf32>, vector<16x8xf32> -> vector<16x8xf32>
    %c0_45 = arith.constant 0 : index
    %c16 = arith.constant 16 : index
    %98 = vector.load %arg12[%c0_45, %c16] : memref<16x32xf32, #tpu.memory_space<vmem>>, vector<16x8xf32>
    tpu.vector_store %arg12[%c0_45, %c16], %97 {strides = array<i32>} : memref<16x32xf32, #tpu.memory_space<vmem>>, vector<16x8xf32>,
    %99 = vector.extract_strided_slice %42 {offsets = [0, 24], sizes = [16, 8], strides = [1, 1]} : vector<16x32xf32> to vector<16x8xf32>
    %100 = vector.extract_strided_slice %43 {offsets = [0, 24], sizes = [16, 8], strides = [1, 1]} : vector<16x32xf32> to vector<16x8xf32>
    %101 = vector.extract_strided_slice %39 {offsets = [0, 24], sizes = [16, 8], strides = [1, 1]} : vector<16x32xf32> to vector<16x8xf32>
    %cst_46 = arith.constant dense<0.000000e+00> : vector<16x16xf32>
    %102 = tpu.matmul %99, %100, %cst_46 {dimension_numbers = #tpu.dot_dimension_numbers<[1], [1], [0], [0], [0, 0, 1, 0], [], []>} : vector<16x8xf32>, vector<16x8xf32>, vector<16x16xf32> -> vector<16x16xf32>
    %103 = arith.addf %102, %16 : vector<16x16xf32>
    %cst_47 = arith.constant dense<0xFF800000> : vector<16xf32>
    %104 = vector.multi_reduction <maximumf>, %103, %cst_47 [1] : vector<16x16xf32> to vector<16xf32>
    %105 = vector.shape_cast %104 : vector<16xf32> to vector<16x1xf32>
    %106 = vector.broadcast %105 : vector<16x1xf32> to vector<16x16xf32>
    %107 = arith.subf %103, %106 : vector<16x16xf32>
    %108 = math.exp %107 : vector<16x16xf32>
    %cst_48 = arith.constant dense<0.000000e+00> : vector<16xf32>
    %109 = vector.multi_reduction <add>, %108, %cst_48 [1] : vector<16x16xf32> to vector<16xf32>
    %110 = vector.shape_cast %109 : vector<16xf32> to vector<16x1xf32>
    %111 = tpu.reciprocal %110 {approx = true} : vector<16x1xf32> -> vector<16x1xf32>
    %112 = vector.broadcast %111 : vector<16x1xf32> to vector<16x16xf32>
    %113 = arith.mulf %108, %112 : vector<16x16xf32>
    %114 = arith.addf %96, %113 : vector<16x16xf32>
    %cst_49 = arith.constant dense<0.000000e+00> : vector<16x8xf32>
    %115 = tpu.matmul %113, %101, %cst_49 {dimension_numbers = #tpu.dot_dimension_numbers<[1], [0], [0], [1], [0, 0, 1, 1], [], []>} : vector<16x16xf32>, vector<16x8xf32>, vector<16x8xf32> -> vector<16x8xf32>
    %c0_50 = arith.constant 0 : index
    %c24 = arith.constant 24 : index
    %116 = vector.load %arg12[%c0_50, %c24] : memref<16x32xf32, #tpu.memory_space<vmem>>, vector<16x8xf32>
    tpu.vector_store %arg12[%c0_50, %c24], %115 {strides = array<i32>} : memref<16x32xf32, #tpu.memory_space<vmem>>, vector<16x8xf32>,
    %cst_51 = arith.constant 2.500000e-01 : f32
    %117 = vector.broadcast %cst_51 : f32 to vector<16x16xf32>
    %118 = arith.mulf %114, %117 : vector<16x16xf32>
    %c0_52 = arith.constant 0 : index
    %c0_53 = arith.constant 0 : index
    %c0_54 = arith.constant 0 : index
    %119 = vector.load %arg11[%c0_52, %c0_53, %c0_54] : memref<2x16x16xf32, #tpu.memory_space<vmem>>, vector<1x16x16xf32>
    %120 = vector.shape_cast %119 : vector<1x16x16xf32> to vector<16x16xf32>
    %121 = vector.shape_cast %118 : vector<16x16xf32> to vector<1x16x16xf32>
    tpu.vector_store %arg11[%c0_52, %c0_53, %c0_54], %121 {strides = array<i32>} : memref<2x16x16xf32, #tpu.memory_space<vmem>>, vector<1x16x16xf32>,
    %c0_55 = arith.constant 0 : index
    %c0_56 = arith.constant 0 : index
    %122 = vector.load %arg12[%c0_55, %c0_56] : memref<16x32xf32, #tpu.memory_space<vmem>>, vector<16x32xf32>
    %123 = vector.extract_strided_slice %22 {offsets = [0, 0], sizes = [32, 32], strides = [1, 1]} : vector<32x96xf32> to vector<32x32xf32>
    %cst_57 = arith.constant dense<0.000000e+00> : vector<16x32xf32>
    %124 = tpu.matmul %122, %123, %cst_57 {dimension_numbers = #tpu.dot_dimension_numbers<[1], [0], [0], [1], [0, 0, 1, 1], [], []>} : vector<16x32xf32>, vector<32x32xf32>, vector<16x32xf32> -> vector<16x32xf32>
    %125 = vector.extract_strided_slice %24 {offsets = [0, 0], sizes = [1, 32], strides = [1, 1]} : vector<1x96xf32> to vector<1x32xf32>
    %126 = vector.broadcast %125 : vector<1x32xf32> to vector<16x32xf32>
    %127 = arith.addf %124, %126 : vector<16x32xf32>
    %128 = arith.addf %0, %127 : vector<16x32xf32>
    %129 = vector.extract_strided_slice %28 {offsets = [0, 0], sizes = [1, 32], strides = [1, 1]} : vector<5x32xf32> to vector<1x32xf32>
    %130 = vector.extract_strided_slice %28 {offsets = [1, 0], sizes = [1, 32], strides = [1, 1]} : vector<5x32xf32> to vector<1x32xf32>
    %cst_58 = arith.constant dense<0.000000e+00> : vector<16xf32>
    %131 = vector.multi_reduction <add>, %128, %cst_58 [1] : vector<16x32xf32> to vector<16xf32>
    %132 = vector.shape_cast %131 : vector<16xf32> to vector<16x1xf32>
    %cst_59 = arith.constant 3.200000e+01 : f32
    %133 = vector.broadcast %cst_59 : f32 to vector<16x1xf32>
    %134 = arith.divf %132, %133 : vector<16x1xf32>
    %135 = vector.broadcast %134 : vector<16x1xf32> to vector<16x32xf32>
    %136 = arith.subf %128, %135 : vector<16x32xf32>
    %137 = arith.mulf %136, %136 : vector<16x32xf32>
    %cst_60 = arith.constant dense<0.000000e+00> : vector<16xf32>
    %138 = vector.multi_reduction <add>, %137, %cst_60 [1] : vector<16x32xf32> to vector<16xf32>
    %139 = vector.shape_cast %138 : vector<16xf32> to vector<16x1xf32>
    %cst_61 = arith.constant 3.200000e+01 : f32
    %140 = vector.broadcast %cst_61 : f32 to vector<16x1xf32>
    %141 = arith.divf %139, %140 : vector<16x1xf32>
    %142 = vector.broadcast %134 : vector<16x1xf32> to vector<16x32xf32>
    %143 = arith.subf %128, %142 : vector<16x32xf32>
    %cst_62 = arith.constant 9.99999974E-6 : f32
    %144 = vector.broadcast %cst_62 : f32 to vector<16x1xf32>
    %145 = arith.addf %141, %144 : vector<16x1xf32>
    %146 = math.rsqrt %145 : vector<16x1xf32>
    %147 = vector.broadcast %146 : vector<16x1xf32> to vector<16x32xf32>
    %148 = arith.mulf %143, %147 : vector<16x32xf32>
    %149 = vector.broadcast %129 : vector<1x32xf32> to vector<16x32xf32>
    %150 = arith.mulf %148, %149 : vector<16x32xf32>
    %151 = vector.broadcast %130 : vector<1x32xf32> to vector<16x32xf32>
    %152 = arith.addf %150, %151 : vector<16x32xf32>
    %153 = vector.extract_strided_slice %22 {offsets = [0, 32], sizes = [32, 64], strides = [1, 1]} : vector<32x96xf32> to vector<32x64xf32>
    %cst_63 = arith.constant dense<0.000000e+00> : vector<16x64xf32>
    %154 = tpu.matmul %152, %153, %cst_63 {dimension_numbers = #tpu.dot_dimension_numbers<[1], [0], [0], [1], [0, 0, 1, 1], [], []>} : vector<16x32xf32>, vector<32x64xf32>, vector<16x64xf32> -> vector<16x64xf32>
    %155 = vector.extract_strided_slice %24 {offsets = [0, 32], sizes = [1, 64], strides = [1, 1]} : vector<1x96xf32> to vector<1x64xf32>
    %156 = vector.broadcast %155 : vector<1x64xf32> to vector<16x64xf32>
    %157 = arith.addf %154, %156 : vector<16x64xf32>
    %cst_64 = arith.constant 0.000000e+00 : f32
    %158 = vector.broadcast %cst_64 : f32 to vector<16x64xf32>
    %159 = arith.maximumf %157, %158 : vector<16x64xf32>
    %cst_65 = arith.constant dense<0.000000e+00> : vector<16x32xf32>
    %160 = tpu.matmul %159, %26, %cst_65 {dimension_numbers = #tpu.dot_dimension_numbers<[1], [0], [0], [1], [0, 0, 1, 1], [], []>} : vector<16x64xf32>, vector<64x32xf32>, vector<16x32xf32> -> vector<16x32xf32>
    %161 = vector.extract_strided_slice %28 {offsets = [2, 0], sizes = [1, 32], strides = [1, 1]} : vector<5x32xf32> to vector<1x32xf32>
    %162 = vector.broadcast %161 : vector<1x32xf32> to vector<16x32xf32>
    %163 = arith.addf %160, %162 : vector<16x32xf32>
    %164 = arith.addf %152, %163 : vector<16x32xf32>
    %165 = vector.extract_strided_slice %28 {offsets = [3, 0], sizes = [1, 32], strides = [1, 1]} : vector<5x32xf32> to vector<1x32xf32>
    %166 = vector.extract_strided_slice %28 {offsets = [4, 0], sizes = [1, 32], strides = [1, 1]} : vector<5x32xf32> to vector<1x32xf32>
    %cst_66 = arith.constant dense<0.000000e+00> : vector<16xf32>
    %167 = vector.multi_reduction <add>, %164, %cst_66 [1] : vector<16x32xf32> to vector<16xf32>
    %168 = vector.shape_cast %167 : vector<16xf32> to vector<16x1xf32>
    %cst_67 = arith.constant 3.200000e+01 : f32
    %169 = vector.broadcast %cst_67 : f32 to vector<16x1xf32>
    %170 = arith.divf %168, %169 : vector<16x1xf32>
    %171 = vector.broadcast %170 : vector<16x1xf32> to vector<16x32xf32>
    %172 = arith.subf %164, %171 : vector<16x32xf32>
    %173 = arith.mulf %172, %172 : vector<16x32xf32>
    %cst_68 = arith.constant dense<0.000000e+00> : vector<16xf32>
    %174 = vector.multi_reduction <add>, %173, %cst_68 [1] : vector<16x32xf32> to vector<16xf32>
    %175 = vector.shape_cast %174 : vector<16xf32> to vector<16x1xf32>
    %cst_69 = arith.constant 3.200000e+01 : f32
    %176 = vector.broadcast %cst_69 : f32 to vector<16x1xf32>
    %177 = arith.divf %175, %176 : vector<16x1xf32>
    %178 = vector.broadcast %170 : vector<16x1xf32> to vector<16x32xf32>
    %179 = arith.subf %164, %178 : vector<16x32xf32>
    %cst_70 = arith.constant 9.99999974E-6 : f32
    %180 = vector.broadcast %cst_70 : f32 to vector<16x1xf32>
    %181 = arith.addf %177, %180 : vector<16x1xf32>
    %182 = math.rsqrt %181 : vector<16x1xf32>
    %183 = vector.broadcast %182 : vector<16x1xf32> to vector<16x32xf32>
    %184 = arith.mulf %179, %183 : vector<16x32xf32>
    %185 = vector.broadcast %165 : vector<1x32xf32> to vector<16x32xf32>
    %186 = arith.mulf %184, %185 : vector<16x32xf32>
    %187 = vector.broadcast %166 : vector<1x32xf32> to vector<16x32xf32>
    %188 = arith.addf %186, %187 : vector<16x32xf32>
    %c1 = arith.constant 1 : index
    %c0_71 = arith.constant 0 : index
    %c0_72 = arith.constant 0 : index
    %189 = vector.load %arg4[%c1, %c0_71, %c0_72] : memref<2x32x96xf32, #tpu.memory_space<vmem>>, vector<1x32x96xf32>
    %190 = vector.shape_cast %189 : vector<1x32x96xf32> to vector<32x96xf32>
    %c1_73 = arith.constant 1 : index
    %c0_74 = arith.constant 0 : index
    %c0_75 = arith.constant 0 : index
    %191 = vector.load %arg5[%c1_73, %c0_74, %c0_75] : memref<2x1x96xf32, #tpu.memory_space<vmem>>, vector<1x1x96xf32>
    %192 = vector.shape_cast %191 : vector<1x1x96xf32> to vector<1x96xf32>
    %c1_76 = arith.constant 1 : index
    %c0_77 = arith.constant 0 : index
    %c0_78 = arith.constant 0 : index
    %193 = vector.load %arg6[%c1_76, %c0_77, %c0_78] : memref<2x32x96xf32, #tpu.memory_space<vmem>>, vector<1x32x96xf32>
    %194 = vector.shape_cast %193 : vector<1x32x96xf32> to vector<32x96xf32>
    %c1_79 = arith.constant 1 : index
    %c0_80 = arith.constant 0 : index
    %c0_81 = arith.constant 0 : index
    %195 = vector.load %arg7[%c1_79, %c0_80, %c0_81] : memref<2x1x96xf32, #tpu.memory_space<vmem>>, vector<1x1x96xf32>
    %196 = vector.shape_cast %195 : vector<1x1x96xf32> to vector<1x96xf32>
    %c1_82 = arith.constant 1 : index
    %c0_83 = arith.constant 0 : index
    %c0_84 = arith.constant 0 : index
    %197 = vector.load %arg8[%c1_82, %c0_83, %c0_84] : memref<2x64x32xf32, #tpu.memory_space<vmem>>, vector<1x64x32xf32>
    %198 = vector.shape_cast %197 : vector<1x64x32xf32> to vector<64x32xf32>
    %c1_85 = arith.constant 1 : index
    %c0_86 = arith.constant 0 : index
    %c0_87 = arith.constant 0 : index
    %199 = vector.load %arg9[%c1_85, %c0_86, %c0_87] : memref<2x5x32xf32, #tpu.memory_space<vmem>>, vector<1x5x32xf32>
    %200 = vector.shape_cast %199 : vector<1x5x32xf32> to vector<5x32xf32>
    %201 = arith.addf %188, %1 : vector<16x32xf32>
    %202 = vector.extract_strided_slice %190 {offsets = [0, 0], sizes = [32, 64], strides = [1, 1]} : vector<32x96xf32> to vector<32x64xf32>
    %cst_88 = arith.constant dense<0.000000e+00> : vector<16x64xf32>
    %203 = tpu.matmul %201, %202, %cst_88 {dimension_numbers = #tpu.dot_dimension_numbers<[1], [0], [0], [1], [0, 0, 1, 1], [], []>} : vector<16x32xf32>, vector<32x64xf32>, vector<16x64xf32> -> vector<16x64xf32>
    %204 = vector.extract_strided_slice %192 {offsets = [0, 0], sizes = [1, 64], strides = [1, 1]} : vector<1x96xf32> to vector<1x64xf32>
    %205 = vector.broadcast %204 : vector<1x64xf32> to vector<16x64xf32>
    %206 = arith.addf %203, %205 : vector<16x64xf32>
    %207 = vector.extract_strided_slice %190 {offsets = [0, 64], sizes = [32, 32], strides = [1, 1]} : vector<32x96xf32> to vector<32x32xf32>
    %cst_89 = arith.constant dense<0.000000e+00> : vector<16x32xf32>
    %208 = tpu.matmul %188, %207, %cst_89 {dimension_numbers = #tpu.dot_dimension_numbers<[1], [0], [0], [1], [0, 0, 1, 1], [], []>} : vector<16x32xf32>, vector<32x32xf32>, vector<16x32xf32> -> vector<16x32xf32>
    %209 = vector.extract_strided_slice %192 {offsets = [0, 64], sizes = [1, 32], strides = [1, 1]} : vector<1x96xf32> to vector<1x32xf32>
    %210 = vector.broadcast %209 : vector<1x32xf32> to vector<16x32xf32>
    %211 = arith.addf %208, %210 : vector<16x32xf32>
    %212 = vector.extract_strided_slice %206 {offsets = [0, 0], sizes = [16, 32], strides = [1, 1]} : vector<16x64xf32> to vector<16x32xf32>
    %cst_90 = arith.constant 0.353553385 : f32
    %213 = vector.broadcast %cst_90 : f32 to vector<16x32xf32>
    %214 = arith.mulf %212, %213 : vector<16x32xf32>
    %215 = vector.extract_strided_slice %206 {offsets = [0, 32], sizes = [16, 32], strides = [1, 1]} : vector<16x64xf32> to vector<16x32xf32>
    %cst_91 = arith.constant 0.000000e+00 : f32
    %216 = vector.broadcast %cst_91 : f32 to vector<16x16xf32>
    %217 = vector.extract_strided_slice %214 {offsets = [0, 0], sizes = [16, 8], strides = [1, 1]} : vector<16x32xf32> to vector<16x8xf32>
    %218 = vector.extract_strided_slice %215 {offsets = [0, 0], sizes = [16, 8], strides = [1, 1]} : vector<16x32xf32> to vector<16x8xf32>
    %219 = vector.extract_strided_slice %211 {offsets = [0, 0], sizes = [16, 8], strides = [1, 1]} : vector<16x32xf32> to vector<16x8xf32>
    %cst_92 = arith.constant dense<0.000000e+00> : vector<16x16xf32>
    %220 = tpu.matmul %217, %218, %cst_92 {dimension_numbers = #tpu.dot_dimension_numbers<[1], [1], [0], [0], [0, 0, 1, 0], [], []>} : vector<16x8xf32>, vector<16x8xf32>, vector<16x16xf32> -> vector<16x16xf32>
    %221 = arith.addf %220, %16 : vector<16x16xf32>
    %cst_93 = arith.constant dense<0xFF800000> : vector<16xf32>
    %222 = vector.multi_reduction <maximumf>, %221, %cst_93 [1] : vector<16x16xf32> to vector<16xf32>
    %223 = vector.shape_cast %222 : vector<16xf32> to vector<16x1xf32>
    %224 = vector.broadcast %223 : vector<16x1xf32> to vector<16x16xf32>
    %225 = arith.subf %221, %224 : vector<16x16xf32>
    %226 = math.exp %225 : vector<16x16xf32>
    %cst_94 = arith.constant dense<0.000000e+00> : vector<16xf32>
    %227 = vector.multi_reduction <add>, %226, %cst_94 [1] : vector<16x16xf32> to vector<16xf32>
    %228 = vector.shape_cast %227 : vector<16xf32> to vector<16x1xf32>
    %229 = tpu.reciprocal %228 {approx = true} : vector<16x1xf32> -> vector<16x1xf32>
    %230 = vector.broadcast %229 : vector<16x1xf32> to vector<16x16xf32>
    %231 = arith.mulf %226, %230 : vector<16x16xf32>
    %232 = arith.addf %216, %231 : vector<16x16xf32>
    %cst_95 = arith.constant dense<0.000000e+00> : vector<16x8xf32>
    %233 = tpu.matmul %231, %219, %cst_95 {dimension_numbers = #tpu.dot_dimension_numbers<[1], [0], [0], [1], [0, 0, 1, 1], [], []>} : vector<16x16xf32>, vector<16x8xf32>, vector<16x8xf32> -> vector<16x8xf32>
    %c0_96 = arith.constant 0 : index
    %c0_97 = arith.constant 0 : index
    %234 = vector.load %arg12[%c0_96, %c0_97] : memref<16x32xf32, #tpu.memory_space<vmem>>, vector<16x8xf32>
    tpu.vector_store %arg12[%c0_96, %c0_97], %233 {strides = array<i32>} : memref<16x32xf32, #tpu.memory_space<vmem>>, vector<16x8xf32>,
    %235 = vector.extract_strided_slice %214 {offsets = [0, 8], sizes = [16, 8], strides = [1, 1]} : vector<16x32xf32> to vector<16x8xf32>
    %236 = vector.extract_strided_slice %215 {offsets = [0, 8], sizes = [16, 8], strides = [1, 1]} : vector<16x32xf32> to vector<16x8xf32>
    %237 = vector.extract_strided_slice %211 {offsets = [0, 8], sizes = [16, 8], strides = [1, 1]} : vector<16x32xf32> to vector<16x8xf32>
    %cst_98 = arith.constant dense<0.000000e+00> : vector<16x16xf32>
    %238 = tpu.matmul %235, %236, %cst_98 {dimension_numbers = #tpu.dot_dimension_numbers<[1], [1], [0], [0], [0, 0, 1, 0], [], []>} : vector<16x8xf32>, vector<16x8xf32>, vector<16x16xf32> -> vector<16x16xf32>
    %239 = arith.addf %238, %16 : vector<16x16xf32>
    %cst_99 = arith.constant dense<0xFF800000> : vector<16xf32>
    %240 = vector.multi_reduction <maximumf>, %239, %cst_99 [1] : vector<16x16xf32> to vector<16xf32>
    %241 = vector.shape_cast %240 : vector<16xf32> to vector<16x1xf32>
    %242 = vector.broadcast %241 : vector<16x1xf32> to vector<16x16xf32>
    %243 = arith.subf %239, %242 : vector<16x16xf32>
    %244 = math.exp %243 : vector<16x16xf32>
    %cst_100 = arith.constant dense<0.000000e+00> : vector<16xf32>
    %245 = vector.multi_reduction <add>, %244, %cst_100 [1] : vector<16x16xf32> to vector<16xf32>
    %246 = vector.shape_cast %245 : vector<16xf32> to vector<16x1xf32>
    %247 = tpu.reciprocal %246 {approx = true} : vector<16x1xf32> -> vector<16x1xf32>
    %248 = vector.broadcast %247 : vector<16x1xf32> to vector<16x16xf32>
    %249 = arith.mulf %244, %248 : vector<16x16xf32>
    %250 = arith.addf %232, %249 : vector<16x16xf32>
    %cst_101 = arith.constant dense<0.000000e+00> : vector<16x8xf32>
    %251 = tpu.matmul %249, %237, %cst_101 {dimension_numbers = #tpu.dot_dimension_numbers<[1], [0], [0], [1], [0, 0, 1, 1], [], []>} : vector<16x16xf32>, vector<16x8xf32>, vector<16x8xf32> -> vector<16x8xf32>
    %c0_102 = arith.constant 0 : index
    %c8_103 = arith.constant 8 : index
    %252 = vector.load %arg12[%c0_102, %c8_103] : memref<16x32xf32, #tpu.memory_space<vmem>>, vector<16x8xf32>
    tpu.vector_store %arg12[%c0_102, %c8_103], %251 {strides = array<i32>} : memref<16x32xf32, #tpu.memory_space<vmem>>, vector<16x8xf32>,
    %253 = vector.extract_strided_slice %214 {offsets = [0, 16], sizes = [16, 8], strides = [1, 1]} : vector<16x32xf32> to vector<16x8xf32>
    %254 = vector.extract_strided_slice %215 {offsets = [0, 16], sizes = [16, 8], strides = [1, 1]} : vector<16x32xf32> to vector<16x8xf32>
    %255 = vector.extract_strided_slice %211 {offsets = [0, 16], sizes = [16, 8], strides = [1, 1]} : vector<16x32xf32> to vector<16x8xf32>
    %cst_104 = arith.constant dense<0.000000e+00> : vector<16x16xf32>
    %256 = tpu.matmul %253, %254, %cst_104 {dimension_numbers = #tpu.dot_dimension_numbers<[1], [1], [0], [0], [0, 0, 1, 0], [], []>} : vector<16x8xf32>, vector<16x8xf32>, vector<16x16xf32> -> vector<16x16xf32>
    %257 = arith.addf %256, %16 : vector<16x16xf32>
    %cst_105 = arith.constant dense<0xFF800000> : vector<16xf32>
    %258 = vector.multi_reduction <maximumf>, %257, %cst_105 [1] : vector<16x16xf32> to vector<16xf32>
    %259 = vector.shape_cast %258 : vector<16xf32> to vector<16x1xf32>
    %260 = vector.broadcast %259 : vector<16x1xf32> to vector<16x16xf32>
    %261 = arith.subf %257, %260 : vector<16x16xf32>
    %262 = math.exp %261 : vector<16x16xf32>
    %cst_106 = arith.constant dense<0.000000e+00> : vector<16xf32>
    %263 = vector.multi_reduction <add>, %262, %cst_106 [1] : vector<16x16xf32> to vector<16xf32>
    %264 = vector.shape_cast %263 : vector<16xf32> to vector<16x1xf32>
    %265 = tpu.reciprocal %264 {approx = true} : vector<16x1xf32> -> vector<16x1xf32>
    %266 = vector.broadcast %265 : vector<16x1xf32> to vector<16x16xf32>
    %267 = arith.mulf %262, %266 : vector<16x16xf32>
    %268 = arith.addf %250, %267 : vector<16x16xf32>
    %cst_107 = arith.constant dense<0.000000e+00> : vector<16x8xf32>
    %269 = tpu.matmul %267, %255, %cst_107 {dimension_numbers = #tpu.dot_dimension_numbers<[1], [0], [0], [1], [0, 0, 1, 1], [], []>} : vector<16x16xf32>, vector<16x8xf32>, vector<16x8xf32> -> vector<16x8xf32>
    %c0_108 = arith.constant 0 : index
    %c16_109 = arith.constant 16 : index
    %270 = vector.load %arg12[%c0_108, %c16_109] : memref<16x32xf32, #tpu.memory_space<vmem>>, vector<16x8xf32>
    tpu.vector_store %arg12[%c0_108, %c16_109], %269 {strides = array<i32>} : memref<16x32xf32, #tpu.memory_space<vmem>>, vector<16x8xf32>,
    %271 = vector.extract_strided_slice %214 {offsets = [0, 24], sizes = [16, 8], strides = [1, 1]} : vector<16x32xf32> to vector<16x8xf32>
    %272 = vector.extract_strided_slice %215 {offsets = [0, 24], sizes = [16, 8], strides = [1, 1]} : vector<16x32xf32> to vector<16x8xf32>
    %273 = vector.extract_strided_slice %211 {offsets = [0, 24], sizes = [16, 8], strides = [1, 1]} : vector<16x32xf32> to vector<16x8xf32>
    %cst_110 = arith.constant dense<0.000000e+00> : vector<16x16xf32>
    %274 = tpu.matmul %271, %272, %cst_110 {dimension_numbers = #tpu.dot_dimension_numbers<[1], [1], [0], [0], [0, 0, 1, 0], [], []>} : vector<16x8xf32>, vector<16x8xf32>, vector<16x16xf32> -> vector<16x16xf32>
    %275 = arith.addf %274, %16 : vector<16x16xf32>
    %cst_111 = arith.constant dense<0xFF800000> : vector<16xf32>
    %276 = vector.multi_reduction <maximumf>, %275, %cst_111 [1] : vector<16x16xf32> to vector<16xf32>
    %277 = vector.shape_cast %276 : vector<16xf32> to vector<16x1xf32>
    %278 = vector.broadcast %277 : vector<16x1xf32> to vector<16x16xf32>
    %279 = arith.subf %275, %278 : vector<16x16xf32>
    %280 = math.exp %279 : vector<16x16xf32>
    %cst_112 = arith.constant dense<0.000000e+00> : vector<16xf32>
    %281 = vector.multi_reduction <add>, %280, %cst_112 [1] : vector<16x16xf32> to vector<16xf32>
    %282 = vector.shape_cast %281 : vector<16xf32> to vector<16x1xf32>
    %283 = tpu.reciprocal %282 {approx = true} : vector<16x1xf32> -> vector<16x1xf32>
    %284 = vector.broadcast %283 : vector<16x1xf32> to vector<16x16xf32>
    %285 = arith.mulf %280, %284 : vector<16x16xf32>
    %286 = arith.addf %268, %285 : vector<16x16xf32>
    %cst_113 = arith.constant dense<0.000000e+00> : vector<16x8xf32>
    %287 = tpu.matmul %285, %273, %cst_113 {dimension_numbers = #tpu.dot_dimension_numbers<[1], [0], [0], [1], [0, 0, 1, 1], [], []>} : vector<16x16xf32>, vector<16x8xf32>, vector<16x8xf32> -> vector<16x8xf32>
    %c0_114 = arith.constant 0 : index
    %c24_115 = arith.constant 24 : index
    %288 = vector.load %arg12[%c0_114, %c24_115] : memref<16x32xf32, #tpu.memory_space<vmem>>, vector<16x8xf32>
    tpu.vector_store %arg12[%c0_114, %c24_115], %287 {strides = array<i32>} : memref<16x32xf32, #tpu.memory_space<vmem>>, vector<16x8xf32>,
    %cst_116 = arith.constant 2.500000e-01 : f32
    %289 = vector.broadcast %cst_116 : f32 to vector<16x16xf32>
    %290 = arith.mulf %286, %289 : vector<16x16xf32>
    %c1_117 = arith.constant 1 : index
    %c0_118 = arith.constant 0 : index
    %c0_119 = arith.constant 0 : index
    %291 = vector.load %arg11[%c1_117, %c0_118, %c0_119] : memref<2x16x16xf32, #tpu.memory_space<vmem>>, vector<1x16x16xf32>
    %292 = vector.shape_cast %291 : vector<1x16x16xf32> to vector<16x16xf32>
    %293 = vector.shape_cast %290 : vector<16x16xf32> to vector<1x16x16xf32>
    tpu.vector_store %arg11[%c1_117, %c0_118, %c0_119], %293 {strides = array<i32>} : memref<2x16x16xf32, #tpu.memory_space<vmem>>, vector<1x16x16xf32>,
    %c0_120 = arith.constant 0 : index
    %c0_121 = arith.constant 0 : index
    %294 = vector.load %arg12[%c0_120, %c0_121] : memref<16x32xf32, #tpu.memory_space<vmem>>, vector<16x32xf32>
    %295 = vector.extract_strided_slice %194 {offsets = [0, 0], sizes = [32, 32], strides = [1, 1]} : vector<32x96xf32> to vector<32x32xf32>
    %cst_122 = arith.constant dense<0.000000e+00> : vector<16x32xf32>
    %296 = tpu.matmul %294, %295, %cst_122 {dimension_numbers = #tpu.dot_dimension_numbers<[1], [0], [0], [1], [0, 0, 1, 1], [], []>} : vector<16x32xf32>, vector<32x32xf32>, vector<16x32xf32> -> vector<16x32xf32>
    %297 = vector.extract_strided_slice %196 {offsets = [0, 0], sizes = [1, 32], strides = [1, 1]} : vector<1x96xf32> to vector<1x32xf32>
    %298 = vector.broadcast %297 : vector<1x32xf32> to vector<16x32xf32>
    %299 = arith.addf %296, %298 : vector<16x32xf32>
    %300 = arith.addf %188, %299 : vector<16x32xf32>
    %301 = vector.extract_strided_slice %200 {offsets = [0, 0], sizes = [1, 32], strides = [1, 1]} : vector<5x32xf32> to vector<1x32xf32>
    %302 = vector.extract_strided_slice %200 {offsets = [1, 0], sizes = [1, 32], strides = [1, 1]} : vector<5x32xf32> to vector<1x32xf32>
    %cst_123 = arith.constant dense<0.000000e+00> : vector<16xf32>
    %303 = vector.multi_reduction <add>, %300, %cst_123 [1] : vector<16x32xf32> to vector<16xf32>
    %304 = vector.shape_cast %303 : vector<16xf32> to vector<16x1xf32>
    %cst_124 = arith.constant 3.200000e+01 : f32
    %305 = vector.broadcast %cst_124 : f32 to vector<16x1xf32>
    %306 = arith.divf %304, %305 : vector<16x1xf32>
    %307 = vector.broadcast %306 : vector<16x1xf32> to vector<16x32xf32>
    %308 = arith.subf %300, %307 : vector<16x32xf32>
    %309 = arith.mulf %308, %308 : vector<16x32xf32>
    %cst_125 = arith.constant dense<0.000000e+00> : vector<16xf32>
    %310 = vector.multi_reduction <add>, %309, %cst_125 [1] : vector<16x32xf32> to vector<16xf32>
    %311 = vector.shape_cast %310 : vector<16xf32> to vector<16x1xf32>
    %cst_126 = arith.constant 3.200000e+01 : f32
    %312 = vector.broadcast %cst_126 : f32 to vector<16x1xf32>
    %313 = arith.divf %311, %312 : vector<16x1xf32>
    %314 = vector.broadcast %306 : vector<16x1xf32> to vector<16x32xf32>
    %315 = arith.subf %300, %314 : vector<16x32xf32>
    %cst_127 = arith.constant 9.99999974E-6 : f32
    %316 = vector.broadcast %cst_127 : f32 to vector<16x1xf32>
    %317 = arith.addf %313, %316 : vector<16x1xf32>
    %318 = math.rsqrt %317 : vector<16x1xf32>
    %319 = vector.broadcast %318 : vector<16x1xf32> to vector<16x32xf32>
    %320 = arith.mulf %315, %319 : vector<16x32xf32>
    %321 = vector.broadcast %301 : vector<1x32xf32> to vector<16x32xf32>
    %322 = arith.mulf %320, %321 : vector<16x32xf32>
    %323 = vector.broadcast %302 : vector<1x32xf32> to vector<16x32xf32>
    %324 = arith.addf %322, %323 : vector<16x32xf32>
    %325 = vector.extract_strided_slice %194 {offsets = [0, 32], sizes = [32, 64], strides = [1, 1]} : vector<32x96xf32> to vector<32x64xf32>
    %cst_128 = arith.constant dense<0.000000e+00> : vector<16x64xf32>
    %326 = tpu.matmul %324, %325, %cst_128 {dimension_numbers = #tpu.dot_dimension_numbers<[1], [0], [0], [1], [0, 0, 1, 1], [], []>} : vector<16x32xf32>, vector<32x64xf32>, vector<16x64xf32> -> vector<16x64xf32>
    %327 = vector.extract_strided_slice %196 {offsets = [0, 32], sizes = [1, 64], strides = [1, 1]} : vector<1x96xf32> to vector<1x64xf32>
    %328 = vector.broadcast %327 : vector<1x64xf32> to vector<16x64xf32>
    %329 = arith.addf %326, %328 : vector<16x64xf32>
    %cst_129 = arith.constant 0.000000e+00 : f32
    %330 = vector.broadcast %cst_129 : f32 to vector<16x64xf32>
    %331 = arith.maximumf %329, %330 : vector<16x64xf32>
    %cst_130 = arith.constant dense<0.000000e+00> : vector<16x32xf32>
    %332 = tpu.matmul %331, %198, %cst_130 {dimension_numbers = #tpu.dot_dimension_numbers<[1], [0], [0], [1], [0, 0, 1, 1], [], []>} : vector<16x64xf32>, vector<64x32xf32>, vector<16x32xf32> -> vector<16x32xf32>
    %333 = vector.extract_strided_slice %200 {offsets = [2, 0], sizes = [1, 32], strides = [1, 1]} : vector<5x32xf32> to vector<1x32xf32>
    %334 = vector.broadcast %333 : vector<1x32xf32> to vector<16x32xf32>
    %335 = arith.addf %332, %334 : vector<16x32xf32>
    %336 = arith.addf %324, %335 : vector<16x32xf32>
    %337 = vector.extract_strided_slice %200 {offsets = [3, 0], sizes = [1, 32], strides = [1, 1]} : vector<5x32xf32> to vector<1x32xf32>
    %338 = vector.extract_strided_slice %200 {offsets = [4, 0], sizes = [1, 32], strides = [1, 1]} : vector<5x32xf32> to vector<1x32xf32>
    %cst_131 = arith.constant dense<0.000000e+00> : vector<16xf32>
    %339 = vector.multi_reduction <add>, %336, %cst_131 [1] : vector<16x32xf32> to vector<16xf32>
    %340 = vector.shape_cast %339 : vector<16xf32> to vector<16x1xf32>
    %cst_132 = arith.constant 3.200000e+01 : f32
    %341 = vector.broadcast %cst_132 : f32 to vector<16x1xf32>
    %342 = arith.divf %340, %341 : vector<16x1xf32>
    %343 = vector.broadcast %342 : vector<16x1xf32> to vector<16x32xf32>
    %344 = arith.subf %336, %343 : vector<16x32xf32>
    %345 = arith.mulf %344, %344 : vector<16x32xf32>
    %cst_133 = arith.constant dense<0.000000e+00> : vector<16xf32>
    %346 = vector.multi_reduction <add>, %345, %cst_133 [1] : vector<16x32xf32> to vector<16xf32>
    %347 = vector.shape_cast %346 : vector<16xf32> to vector<16x1xf32>
    %cst_134 = arith.constant 3.200000e+01 : f32
    %348 = vector.broadcast %cst_134 : f32 to vector<16x1xf32>
    %349 = arith.divf %347, %348 : vector<16x1xf32>
    %350 = vector.broadcast %342 : vector<16x1xf32> to vector<16x32xf32>
    %351 = arith.subf %336, %350 : vector<16x32xf32>
    %cst_135 = arith.constant 9.99999974E-6 : f32
    %352 = vector.broadcast %cst_135 : f32 to vector<16x1xf32>
    %353 = arith.addf %349, %352 : vector<16x1xf32>
    %354 = math.rsqrt %353 : vector<16x1xf32>
    %355 = vector.broadcast %354 : vector<16x1xf32> to vector<16x32xf32>
    %356 = arith.mulf %351, %355 : vector<16x32xf32>
    %357 = vector.broadcast %337 : vector<1x32xf32> to vector<16x32xf32>
    %358 = arith.mulf %356, %357 : vector<16x32xf32>
    %359 = vector.broadcast %338 : vector<1x32xf32> to vector<16x32xf32>
    %360 = arith.addf %358, %359 : vector<16x32xf32>
    %c0_136 = arith.constant 0 : index
    %c0_137 = arith.constant 0 : index
    %361 = vector.load %arg10[%c0_136, %c0_137] : memref<16x32xf32, #tpu.memory_space<vmem>>, vector<16x32xf32>
    tpu.vector_store %arg10[%c0_136, %c0_137], %360 {strides = array<i32>} : memref<16x32xf32, #tpu.memory_space<vmem>>, vector<16x32xf32>,
    return
  }
  func.func @transform_0(%arg0: i32) -> (i32, i32) {
    %c0_i32 = arith.constant 0 : i32
    %c0_i32_0 = arith.constant 0 : i32
    %c0_i32_1 = arith.constant 0 : i32
    return %c0_i32, %c0_i32_0 : i32, i32
  }
  func.func @transform_1(%arg0: i32) -> (i32, i32) {
    %c0_i32 = arith.constant 0 : i32
    %c0_i32_0 = arith.constant 0 : i32
    %c0_i32_1 = arith.constant 0 : i32
    return %c0_i32, %c0_i32_0 : i32, i32
  }
  func.func @transform_2(%arg0: i32) -> (i32, i32) {
    %c0_i32 = arith.constant 0 : i32
    %c0_i32_0 = arith.constant 0 : i32
    %c0_i32_1 = arith.constant 0 : i32
    return %c0_i32, %c0_i32_0 : i32, i32
  }
  func.func @transform_3(%arg0: i32) -> (i32, i32, i32) {
    %c0_i32 = arith.constant 0 : i32
    %c0_i32_0 = arith.constant 0 : i32
    %c0_i32_1 = arith.constant 0 : i32
    %c0_i32_2 = arith.constant 0 : i32
    return %c0_i32, %c0_i32_0, %c0_i32_1 : i32, i32, i32
  }
  func.func @transform_4(%arg0: i32) -> (i32, i32, i32) {
    %c0_i32 = arith.constant 0 : i32
    %c0_i32_0 = arith.constant 0 : i32
    %c0_i32_1 = arith.constant 0 : i32
    %c0_i32_2 = arith.constant 0 : i32
    return %c0_i32, %c0_i32_0, %c0_i32_1 : i32, i32, i32
  }
  func.func @transform_5(%arg0: i32) -> (i32, i32, i32) {
    %c0_i32 = arith.constant 0 : i32
    %c0_i32_0 = arith.constant 0 : i32
    %c0_i32_1 = arith.constant 0 : i32
    %c0_i32_2 = arith.constant 0 : i32
    return %c0_i32, %c0_i32_0, %c0_i32_1 : i32, i32, i32
  }
  func.func @transform_6(%arg0: i32) -> (i32, i32, i32) {
    %c0_i32 = arith.constant 0 : i32
    %c0_i32_0 = arith.constant 0 : i32
    %c0_i32_1 = arith.constant 0 : i32
    %c0_i32_2 = arith.constant 0 : i32
    return %c0_i32, %c0_i32_0, %c0_i32_1 : i32, i32, i32
  }
  func.func @transform_7(%arg0: i32) -> (i32, i32, i32) {
    %c0_i32 = arith.constant 0 : i32
    %c0_i32_0 = arith.constant 0 : i32
    %c0_i32_1 = arith.constant 0 : i32
    %c0_i32_2 = arith.constant 0 : i32
    return %c0_i32, %c0_i32_0, %c0_i32_1 : i32, i32, i32
  }
  func.func @transform_8(%arg0: i32) -> (i32, i32, i32) {
    %c0_i32 = arith.constant 0 : i32
    %c0_i32_0 = arith.constant 0 : i32
    %c0_i32_1 = arith.constant 0 : i32
    %c0_i32_2 = arith.constant 0 : i32
    return %c0_i32, %c0_i32_0, %c0_i32_1 : i32, i32, i32
  }
  func.func @transform_9(%arg0: i32) -> (i32, i32) {
    %c0_i32 = arith.constant 0 : i32
    %c0_i32_0 = arith.constant 0 : i32
    %c0_i32_1 = arith.constant 0 : i32
    return %c0_i32, %c0_i32_0 : i32, i32
  }
  func.func @transform_10(%arg0: i32) -> (i32, i32, i32) {
    %c0_i32 = arith.constant 0 : i32
    %c0_i32_0 = arith.constant 0 : i32
    %c0_i32_1 = arith.constant 0 : i32
    %c0_i32_2 = arith.constant 0 : i32
    return %c0_i32, %c0_i32_0, %c0_i32_1 : i32, i32, i32
  }
}

</mosaic_0001>

<llo_original>
// kernel: transformer_decoder.1
$region0: #{transformer_decoder.1}
  #allocation0 [shape = 'u32[]', space=smem, size = 0x4, offset = 0x4, fixed_abs, tag = 'smem constant byte address 0x4 - core index']
  #allocation1 [shape = 'u32[72,128]{1,0:T(1,128)}', space=vmem, size = 0x9000, scoped, tag = 'internal scratch']
  #allocation2 [shape = 'f32[16,32]{1,0:T(8,128)}', space=vmem, size = 0x2000, scoped, tag = 'scratch operand']
  %s0 = inlined_call_operand.vmem [shape: f32[16,32], index: 0, kind: input, shape index: {}]
  %s1 = inlined_call_operand.vmem [shape: f32[16,32], index: 1, kind: input, shape index: {}]
  %s2 = inlined_call_operand.vmem [shape: f32[1,16], index: 2, kind: input, shape index: {}]
  %s3 = inlined_call_operand.vmem [shape: f32[2,32,96], index: 3, kind: input, shape index: {}]
  %s4 = inlined_call_operand.vmem [shape: f32[2,1,96], index: 4, kind: input, shape index: {}]
  %s5 = inlined_call_operand.vmem [shape: f32[2,32,96], index: 5, kind: input, shape index: {}]
  %s6 = inlined_call_operand.vmem [shape: f32[2,1,96], index: 6, kind: input, shape index: {}]
  %s7 = inlined_call_operand.vmem [shape: f32[2,64,32], index: 7, kind: input, shape index: {}]
  %s8 = inlined_call_operand.vmem [shape: f32[2,5,32], index: 8, kind: input, shape index: {}]
  %s9 = inlined_call_operand.hbm [shape: f32[16,32], index: 9, kind: output, shape index: {0}]
  %s10 = inlined_call_operand.vmem [shape: f32[2,16,16], index: 10, kind: output, shape index: {1}]
  %11 = xla_tuple %s9, %s10
  %s12 = sld [smem:[#allocation0]]
  $region54: #{transformer_decoder.1} parent=0
    _
  %s14 = ssub.s32 1, %s12
  %s15 = scalar_select 0, %s14, %s12
  $region1: #{transformer_decoder.1} parent=0
    #allocation3 [shape = 'u8[8192]{0}', space=vmem, size = 0x2000, scoped, tag = 'output window, operand 0, single buffered']
    #allocation4 [shape = 's32[1]{0}', space=sflag, size = 0x4, scoped, tag = 'scoped memory for transformer_decoder.1']
    %16 = vsyncpa [#allocation4], 0
    // Predicated region
    $region2: #{transformer_decoder.1} parent=1 // pred_check
      _
    $region3: #{transformer_decoder.1} parent=1 // pred_check_branch
      %18 = sbr.rel (0) target = $region5
    $region4: #{transformer_decoder.1} parent=1 // pred_region
      _
    $region5: #{transformer_decoder.1} parent=1 // pred_fallthru
      _
    // Predicated region
    $region6: #{transformer_decoder.1} parent=1 // pred_check
      _
    $region7: #{transformer_decoder.1} parent=1 // pred_check_branch
      %20 = sbr.rel (0) target = $region9
    $region8: #{transformer_decoder.1} parent=1 // pred_region
      _
    $region9: #{transformer_decoder.1} parent=1 // pred_fallthru
      _
    // Predicated region
    $region10: #{transformer_decoder.1} parent=1 // pred_check
      _
    $region11: #{transformer_decoder.1} parent=1 // pred_check_branch
      %22 = sbr.rel (0) target = $region13
    $region12: #{transformer_decoder.1} parent=1 // pred_region
      _
    $region13: #{transformer_decoder.1} parent=1 // pred_fallthru
      _
    // Predicated region
    $region14: #{transformer_decoder.1} parent=1 // pred_check
      _
    $region15: #{transformer_decoder.1} parent=1 // pred_check_branch
      %24 = sbr.rel (0) target = $region17
    $region16: #{transformer_decoder.1} parent=1 // pred_region
      _
    $region17: #{transformer_decoder.1} parent=1 // pred_fallthru
      _
    // Predicated region
    $region18: #{transformer_decoder.1} parent=1 // pred_check
      _
    $region19: #{transformer_decoder.1} parent=1 // pred_check_branch
      %26 = sbr.rel (0) target = $region21
    $region20: #{transformer_decoder.1} parent=1 // pred_region
      _
    $region21: #{transformer_decoder.1} parent=1 // pred_fallthru
      _
    // Predicated region
    $region22: #{transformer_decoder.1} parent=1 // pred_check
      _
    $region23: #{transformer_decoder.1} parent=1 // pred_check_branch
      %28 = sbr.rel (0) target = $region25
    $region24: #{transformer_decoder.1} parent=1 // pred_region
      _
    $region25: #{transformer_decoder.1} parent=1 // pred_fallthru
      _
    // Predicated region
    $region26: #{transformer_decoder.1} parent=1 // pred_check
      _
    $region27: #{transformer_decoder.1} parent=1 // pred_check_branch
      %30 = sbr.rel (0) target = $region29
    $region28: #{transformer_decoder.1} parent=1 // pred_region
      _
    $region29: #{transformer_decoder.1} parent=1 // pred_fallthru
      _
    // Predicated region
    $region30: #{transformer_decoder.1} parent=1 // pred_check
      _
    $region31: #{transformer_decoder.1} parent=1 // pred_check_branch
      %32 = sbr.rel (0) target = $region33
    $region32: #{transformer_decoder.1} parent=1 // pred_region
      _
    $region33: #{transformer_decoder.1} parent=1 // pred_fallthru
      _
    // Predicated region
    $region34: #{transformer_decoder.1} parent=1 // pred_check
      _
    $region35: #{transformer_decoder.1} parent=1 // pred_check_branch
      %34 = sbr.rel (0) target = $region37
    $region36: #{transformer_decoder.1} parent=1 // pred_region
      _
    $region37: #{transformer_decoder.1} parent=1 // pred_fallthru
      _
    %v35 = vld [vmem:[%s0] sm:$0xff]
    %v36 = vld [vmem:[%s0 + $0x8] sm:$0xff]
    %v37 = vld [vmem:[%s1] sm:$0xff]
    %v38 = vld [vmem:[%s1 + $0x8] sm:$0xff]
    %v39 = vlaneseq
    %v40 = vshrl.u32 %v39, 7
    %v41 = vadd.s32 %v40, 8
    %v42 = vlaneseq
    %v43 = vand.u32 %v42, 127
    %v44 = vand.u32 %v40, 1
    %v45 = vand.u32 %v41, 1
    %v46 = vand.u32 %v43, 1
    %vm47 = vcmp.eq.s32.totalorder %v44, %v46
    %vm48 = vcmp.eq.s32.totalorder %v45, %v46
    %v49 = vsel %vm47, 0.0, -1e+30
    %v50 = vsel %vm48, 0.0, -1e+30
    %v51 = vld [vmem:[%s2] sm:$0x1]
    %v52 = vmul.f32 %v51, -1e+30
    %v54 = vperm.slane %v52, 0
    %v56 = vadd.f32 %v49, %v54
    %v57 = vadd.f32 %v50, %v54
    %v58 = vld [vmem:[%s3] sm:$0xff]
    %v59 = vld [vmem:[%s3 + $0x8] sm:$0xff]
    %v60 = vld [vmem:[%s3 + $0x10] sm:$0xff]
    %v61 = vld [vmem:[%s3 + $0x18] sm:$0xff]
    %v62 = vld [vmem:[%s4] sm:$0x1]
    %v63 = vld [vmem:[%s5] sm:$0xff]
    %v64 = vld [vmem:[%s5 + $0x8] sm:$0xff]
    %v65 = vld [vmem:[%s5 + $0x10] sm:$0xff]
    %v66 = vld [vmem:[%s5 + $0x18] sm:$0xff]
    %v67 = vld [vmem:[%s6] sm:$0x1]
    %v68 = vld [vmem:[%s7] sm:$0xff]
    %v69 = vld [vmem:[%s7 + $0x8] sm:$0xff]
    %v70 = vld [vmem:[%s7 + $0x10] sm:$0xff]
    %v71 = vld [vmem:[%s7 + $0x18] sm:$0xff]
    %v72 = vld [vmem:[%s7 + $0x20] sm:$0xff]
    %v73 = vld [vmem:[%s7 + $0x28] sm:$0xff]
    %v74 = vld [vmem:[%s7 + $0x30] sm:$0xff]
    %v75 = vld [vmem:[%s7 + $0x38] sm:$0xff]
    %v76 = vld [vmem:[%s8] sm:$0x1f]
    %v77 = vadd.f32 %v35, %v37
    %v78 = vadd.f32 %v36, %v38
    %v80 = vperm.slane %v62, 0
    %vm82 = vcmask 261120
    %v84 = vsel %vm82, %v77, 0
    %v87 = vsel %vm82, %v78, 0
    %89 = vmatpush.msra.mxu0 0.0
    %90 = vmatpush.msra.mxu0 0.0
    %91 = vmatpush.msra.mxu0 0.0
    %92 = vmatpush.msra.mxu0 0.0
    %93 = vmatpush.msra.mxu0 0.0
    %94 = vmatpush.msra.mxu0 0.0
    %95 = vmatpush.msra.mxu0 0.0
    %96 = vmatpush.msra.mxu0 0.0
    %97 = vmatpush.msra.mxu0 0.0
    %98 = vmatpush.msra.mxu0 0.0
    %99 = vmatpush.msra.mxu0 0.0
    %100 = vmatpush.msra.mxu0 0.0
    %101 = vmatpush.msra.mxu0 %v61
    %102 = vmatpush.msra.mxu0 %v60
    %103 = vmatpush.msra.mxu0 %v59
    %104 = vmatpush.msra.mxu0 %v58
    %105 = vmatmul.f32.gmra.mxu0 %v84
    %v106 = vpop.f32.mrf.mxu0
    %v107 = vadd.f32 %v80, %v106
    %108 = vmatmul.f32.gmra.mxu0 %v87
    %v109 = vpop.f32.mrf.mxu0
    %v110 = vadd.f32 %v80, %v109
    %111 = vdwg.mxu0
    %116 = vrot.lane.b32.xlu0 %v58, 64
    %v117 = vpop.permute.xlu0 %116
    %118 = vrot.lane.b32.xlu0 %v59, 64
    %v119 = vpop.permute.xlu0 %118
    %120 = vrot.lane.b32.xlu0 %v60, 64
    %v121 = vpop.permute.xlu0 %120
    %122 = vrot.lane.b32.xlu0 %v61, 64
    %v123 = vpop.permute.xlu0 %122
    %128 = vrot.lane.b32.xlu0 %v80, 64
    %v129 = vpop.permute.xlu0 %128
    %v132 = vsel %vm82, %v35, 0
    %v135 = vsel %vm82, %v36, 0
    %137 = vmatpush.msra.mxu0 0.0
    %138 = vmatpush.msra.mxu0 0.0
    %139 = vmatpush.msra.mxu0 0.0
    %140 = vmatpush.msra.mxu0 0.0
    %141 = vmatpush.msra.mxu0 0.0
    %142 = vmatpush.msra.mxu0 0.0
    %143 = vmatpush.msra.mxu0 0.0
    %144 = vmatpush.msra.mxu0 0.0
    %145 = vmatpush.msra.mxu0 0.0
    %146 = vmatpush.msra.mxu0 0.0
    %147 = vmatpush.msra.mxu0 0.0
    %148 = vmatpush.msra.mxu0 0.0
    %149 = vmatpush.msra.mxu0 %v123
    %150 = vmatpush.msra.mxu0 %v121
    %151 = vmatpush.msra.mxu0 %v119
    %152 = vmatpush.msra.mxu0 %v117
    %153 = vmatmul.f32.gmra.mxu0 %v132
    %v154 = vpop.f32.mrf.mxu0
    %v155 = vadd.f32 %v129, %v154
    %156 = vmatmul.f32.gmra.mxu0 %v135
    %v157 = vpop.f32.mrf.mxu0
    %v158 = vadd.f32 %v129, %v157
    %159 = vdwg.mxu0
    %v160 = vmul.f32 %v107, 0.35355338
    %v161 = vmul.f32 %v110, 0.35355338
    %164 = vrot.lane.b32.xlu0 %v107, 96
    %v165 = vpop.permute.xlu0 %164
    %166 = vrot.lane.b32.xlu0 %v110, 96
    %v167 = vpop.permute.xlu0 %166
    %vm168 = vcmask 64512
    %v170 = vsel %vm168, %v160, 0
    %v173 = vsel %vm168, %v161, 0
    %v175 = vsel %vm168, %v165, 0
    %v177 = vsel %vm168, %v167, 0
    %179 = vmatpush.xpose.msra.mxu0 0.0
    %180 = vmatpush.xpose.msra.mxu0 0.0
    %181 = vmatpush.xpose.msra.mxu0 0.0
    %182 = vmatpush.xpose.msra.mxu0 0.0
    %183 = vmatpush.xpose.msra.mxu0 0.0
    %184 = vmatpush.xpose.msra.mxu0 0.0
    %185 = vmatpush.xpose.msra.mxu0 0.0
    %186 = vmatpush.xpose.msra.mxu0 0.0
    %187 = vmatpush.xpose.msra.mxu0 0.0
    %188 = vmatpush.xpose.msra.mxu0 0.0
    %189 = vmatpush.xpose.msra.mxu0 0.0
    %190 = vmatpush.xpose.msra.mxu0 0.0
    %191 = vmatpush.xpose.msra.mxu0 0.0
    %192 = vmatpush.xpose.msra.mxu0 0.0
    %193 = vmatpush.xpose.msra.mxu0 %v177
    %194 = vmatpush.xpose.msra.mxu0 %v175
    %195 = vmatmul.f32.gmra.mxu0 %v170
    %v196 = vpop.f32.mrf.mxu0
    %v197 = vadd.f32 %v56, %v196
    %198 = vmatmul.f32.gmra.mxu0 %v173
    %v199 = vpop.f32.mrf.mxu0
    %v200 = vadd.f32 %v57, %v199
    %201 = vdwg.mxu0
    %vm202 = vcmask 130048
    %v203 = vsel %vm202, %v197, -inf
    %204 = vmax.xlane.f32.xlu0 %v203
    %v205 = vpop.xlane.xlu0 %204
    %v206 = vsel %vm202, %v200, -inf
    %207 = vmax.xlane.f32.xlu0 %v206
    %v208 = vpop.xlane.xlu0 %207
    %v209 = vsub.f32 %v197, %v205
    %v210 = vsub.f32 %v200, %v208
    %v211 = vmul.f32 %v209, 1.442695
    %v212 = vpow.pop %v211
    %v213 = vmul.f32 %v210, 1.442695
    %v214 = vpow.pop %v213
    %v215 = vsel %vm202, %v212, 0.0
    %216 = vadd.xlane.f32.xlu0 %v215
    %v217 = vpop.xlane.xlu0 %216
    %v218 = vsel %vm202, %v214, 0.0
    %219 = vadd.xlane.f32.xlu0 %v218
    %v220 = vpop.xlane.xlu0 %219
    %v221 = vrcp.pop %v217
    %v222 = vrcp.pop %v220
    %v223 = vmul.f32 %v212, %v221
    %v224 = vmul.f32 %v214, %v222
    %v225 = vadd.f32 %v223, 0.0
    %v226 = vadd.f32 %v224, 0.0
    %v228 = vsel %vm202, %v223, 0
    %v231 = vsel %vm202, %v224, 0
    %233 = vmatpush.msra.mxu0 0.0
    %234 = vmatpush.msra.mxu0 0.0
    %235 = vmatpush.msra.mxu0 0.0
    %236 = vmatpush.msra.mxu0 0.0
    %237 = vmatpush.msra.mxu0 0.0
    %238 = vmatpush.msra.mxu0 0.0
    %239 = vmatpush.msra.mxu0 0.0
    %240 = vmatpush.msra.mxu0 0.0
    %241 = vmatpush.msra.mxu0 0.0
    %242 = vmatpush.msra.mxu0 0.0
    %243 = vmatpush.msra.mxu0 0.0
    %244 = vmatpush.msra.mxu0 0.0
    %245 = vmatpush.msra.mxu0 0.0
    %246 = vmatpush.msra.mxu0 0.0
    %247 = vmatpush.msra.mxu0 %v158
    %248 = vmatpush.msra.mxu0 %v155
    %249 = vmatmul.f32.gmra.mxu0 %v228
    %v250 = vpop.f32.mrf.mxu0
    %v251 = vadd.f32 0.0, %v250
    %252 = vmatmul.f32.gmra.mxu0 %v231
    %v253 = vpop.f32.mrf.mxu0
    %v254 = vadd.f32 0.0, %v253
    %255 = vdwg.mxu0
    %256 = vst.msk [vmem:[#allocation2] sm:$0xff] %vm168, %v251
    %257 = vst.msk [vmem:[#allocation2 + $0x8] sm:$0xff] %vm168, %v254
    %258 = vrot.lane.b32.xlu0 %v160, 120
    %v259 = vpop.permute.xlu0 %258
    %260 = vrot.lane.b32.xlu0 %v161, 120
    %v261 = vpop.permute.xlu0 %260
    %262 = vrot.lane.b32.xlu0 %v107, 88
    %v263 = vpop.permute.xlu0 %262
    %264 = vrot.lane.b32.xlu0 %v110, 88
    %v265 = vpop.permute.xlu0 %264
    %v266 = vsel %vm168, %v259, 0
    %v268 = vsel %vm168, %v261, 0
    %v270 = vsel %vm168, %v263, 0
    %v272 = vsel %vm168, %v265, 0
    %274 = vmatpush.xpose.msra.mxu0 0.0
    %275 = vmatpush.xpose.msra.mxu0 0.0
    %276 = vmatpush.xpose.msra.mxu0 0.0
    %277 = vmatpush.xpose.msra.mxu0 0.0
    %278 = vmatpush.xpose.msra.mxu0 0.0
    %279 = vmatpush.xpose.msra.mxu0 0.0
    %280 = vmatpush.xpose.msra.mxu0 0.0
    %281 = vmatpush.xpose.msra.mxu0 0.0
    %282 = vmatpush.xpose.msra.mxu0 0.0
    %283 = vmatpush.xpose.msra.mxu0 0.0
    %284 = vmatpush.xpose.msra.mxu0 0.0
    %285 = vmatpush.xpose.msra.mxu0 0.0
    %286 = vmatpush.xpose.msra.mxu0 0.0
    %287 = vmatpush.xpose.msra.mxu0 0.0
    %288 = vmatpush.xpose.msra.mxu0 %v272
    %289 = vmatpush.xpose.msra.mxu0 %v270
    %290 = vmatmul.f32.gmra.mxu0 %v266
    %v291 = vpop.f32.mrf.mxu0
    %v292 = vadd.f32 %v56, %v291
    %293 = vmatmul.f32.gmra.mxu0 %v268
    %v294 = vpop.f32.mrf.mxu0
    %v295 = vadd.f32 %v57, %v294
    %296 = vdwg.mxu0
    %v297 = vsel %vm202, %v292, -inf
    %298 = vmax.xlane.f32.xlu0 %v297
    %v299 = vpop.xlane.xlu0 %298
    %v300 = vsel %vm202, %v295, -inf
    %301 = vmax.xlane.f32.xlu0 %v300
    %v302 = vpop.xlane.xlu0 %301
    %v303 = vsub.f32 %v292, %v299
    %v304 = vsub.f32 %v295, %v302
    %v305 = vmul.f32 %v303, 1.442695
    %v306 = vpow.pop %v305
    %v307 = vmul.f32 %v304, 1.442695
    %v308 = vpow.pop %v307
    %v309 = vsel %vm202, %v306, 0.0
    %310 = vadd.xlane.f32.xlu0 %v309
    %v311 = vpop.xlane.xlu0 %310
    %v312 = vsel %vm202, %v308, 0.0
    %313 = vadd.xlane.f32.xlu0 %v312
    %v314 = vpop.xlane.xlu0 %313
    %v315 = vrcp.pop %v311
    %v316 = vrcp.pop %v314
    %v317 = vmul.f32 %v306, %v315
    %v318 = vmul.f32 %v308, %v316
    %v319 = vadd.f32 %v225, %v317
    %v320 = vadd.f32 %v226, %v318
    %323 = vrot.lane.b32.xlu0 %v155, 120
    %v324 = vpop.permute.xlu0 %323
    %325 = vrot.lane.b32.xlu0 %v158, 120
    %v326 = vpop.permute.xlu0 %325
    %v330 = vsel %vm202, %v317, 0
    %v333 = vsel %vm202, %v318, 0
    %335 = vmatpush.msra.mxu0 0.0
    %336 = vmatpush.msra.mxu0 0.0
    %337 = vmatpush.msra.mxu0 0.0
    %338 = vmatpush.msra.mxu0 0.0
    %339 = vmatpush.msra.mxu0 0.0
    %340 = vmatpush.msra.mxu0 0.0
    %341 = vmatpush.msra.mxu0 0.0
    %342 = vmatpush.msra.mxu0 0.0
    %343 = vmatpush.msra.mxu0 0.0
    %344 = vmatpush.msra.mxu0 0.0
    %345 = vmatpush.msra.mxu0 0.0
    %346 = vmatpush.msra.mxu0 0.0
    %347 = vmatpush.msra.mxu0 0.0
    %348 = vmatpush.msra.mxu0 0.0
    %349 = vmatpush.msra.mxu0 %v326
    %350 = vmatpush.msra.mxu0 %v324
    %351 = vmatmul.f32.gmra.mxu0 %v330
    %v352 = vpop.f32.mrf.mxu0
    %v353 = vadd.f32 0.0, %v352
    %354 = vmatmul.f32.gmra.mxu0 %v333
    %v355 = vpop.f32.mrf.mxu0
    %v356 = vadd.f32 0.0, %v355
    %357 = vdwg.mxu0
    %360 = vrot.lane.b32.xlu0 %v353, 8
    %v361 = vpop.permute.xlu0 %360
    %362 = vrot.lane.b32.xlu0 %v356, 8
    %v363 = vpop.permute.xlu0 %362
    %vm366 = vcmask 130112
    %367 = vst.msk [vmem:[#allocation2] sm:$0xff] %vm366, %v361
    %368 = vst.msk [vmem:[#allocation2 + $0x8] sm:$0xff] %vm366, %v363
    %369 = vrot.lane.b32.xlu0 %v160, 112
    %v370 = vpop.permute.xlu0 %369
    %371 = vrot.lane.b32.xlu0 %v161, 112
    %v372 = vpop.permute.xlu0 %371
    %373 = vrot.lane.b32.xlu0 %v107, 80
    %v374 = vpop.permute.xlu0 %373
    %375 = vrot.lane.b32.xlu0 %v110, 80
    %v376 = vpop.permute.xlu0 %375
    %v377 = vsel %vm168, %v370, 0
    %v379 = vsel %vm168, %v372, 0
    %v381 = vsel %vm168, %v374, 0
    %v383 = vsel %vm168, %v376, 0
    %385 = vmatpush.xpose.msra.mxu0 0.0
    %386 = vmatpush.xpose.msra.mxu0 0.0
    %387 = vmatpush.xpose.msra.mxu0 0.0
    %388 = vmatpush.xpose.msra.mxu0 0.0
    %389 = vmatpush.xpose.msra.mxu0 0.0
    %390 = vmatpush.xpose.msra.mxu0 0.0
    %391 = vmatpush.xpose.msra.mxu0 0.0
    %392 = vmatpush.xpose.msra.mxu0 0.0
    %393 = vmatpush.xpose.msra.mxu0 0.0
    %394 = vmatpush.xpose.msra.mxu0 0.0
    %395 = vmatpush.xpose.msra.mxu0 0.0
    %396 = vmatpush.xpose.msra.mxu0 0.0
    %397 = vmatpush.xpose.msra.mxu0 0.0
    %398 = vmatpush.xpose.msra.mxu0 0.0
    %399 = vmatpush.xpose.msra.mxu0 %v383
    %400 = vmatpush.xpose.msra.mxu0 %v381
    %401 = vmatmul.f32.gmra.mxu0 %v377
    %v402 = vpop.f32.mrf.mxu0
    %v403 = vadd.f32 %v56, %v402
    %404 = vmatmul.f32.gmra.mxu0 %v379
    %v405 = vpop.f32.mrf.mxu0
    %v406 = vadd.f32 %v57, %v405
    %407 = vdwg.mxu0
    %v408 = vsel %vm202, %v403, -inf
    %409 = vmax.xlane.f32.xlu0 %v408
    %v410 = vpop.xlane.xlu0 %409
    %v411 = vsel %vm202, %v406, -inf
    %412 = vmax.xlane.f32.xlu0 %v411
    %v413 = vpop.xlane.xlu0 %412
    %v414 = vsub.f32 %v403, %v410
    %v415 = vsub.f32 %v406, %v413
    %v416 = vmul.f32 %v414, 1.442695
    %v417 = vpow.pop %v416
    %v418 = vmul.f32 %v415, 1.442695
    %v419 = vpow.pop %v418
    %v420 = vsel %vm202, %v417, 0.0
    %421 = vadd.xlane.f32.xlu0 %v420
    %v422 = vpop.xlane.xlu0 %421
    %v423 = vsel %vm202, %v419, 0.0
    %424 = vadd.xlane.f32.xlu0 %v423
    %v425 = vpop.xlane.xlu0 %424
    %v426 = vrcp.pop %v422
    %v427 = vrcp.pop %v425
    %v428 = vmul.f32 %v417, %v426
    %v429 = vmul.f32 %v419, %v427
    %v430 = vadd.f32 %v319, %v428
    %v431 = vadd.f32 %v320, %v429
    %432 = vrot.lane.b32.xlu0 %v155, 112
    %v433 = vpop.permute.xlu0 %432
    %434 = vrot.lane.b32.xlu0 %v158, 112
    %v435 = vpop.permute.xlu0 %434
    %v439 = vsel %vm202, %v428, 0
    %v442 = vsel %vm202, %v429, 0
    %444 = vmatpush.msra.mxu0 0.0
    %445 = vmatpush.msra.mxu0 0.0
    %446 = vmatpush.msra.mxu0 0.0
    %447 = vmatpush.msra.mxu0 0.0
    %448 = vmatpush.msra.mxu0 0.0
    %449 = vmatpush.msra.mxu0 0.0
    %450 = vmatpush.msra.mxu0 0.0
    %451 = vmatpush.msra.mxu0 0.0
    %452 = vmatpush.msra.mxu0 0.0
    %453 = vmatpush.msra.mxu0 0.0
    %454 = vmatpush.msra.mxu0 0.0
    %455 = vmatpush.msra.mxu0 0.0
    %456 = vmatpush.msra.mxu0 0.0
    %457 = vmatpush.msra.mxu0 0.0
    %458 = vmatpush.msra.mxu0 %v435
    %459 = vmatpush.msra.mxu0 %v433
    %460 = vmatmul.f32.gmra.mxu0 %v439
    %v461 = vpop.f32.mrf.mxu0
    %v462 = vadd.f32 0.0, %v461
    %463 = vmatmul.f32.gmra.mxu0 %v442
    %v464 = vpop.f32.mrf.mxu0
    %v465 = vadd.f32 0.0, %v464
    %466 = vdwg.mxu0
    %469 = vrot.lane.b32.xlu0 %v462, 16
    %v470 = vpop.permute.xlu0 %469
    %471 = vrot.lane.b32.xlu0 %v465, 16
    %v472 = vpop.permute.xlu0 %471
    %vm475 = vcmask 195712
    %476 = vst.msk [vmem:[#allocation2] sm:$0xff] %vm475, %v470
    %477 = vst.msk [vmem:[#allocation2 + $0x8] sm:$0xff] %vm475, %v472
    %478 = vrot.lane.b32.xlu0 %v160, 104
    %v479 = vpop.permute.xlu0 %478
    %480 = vrot.lane.b32.xlu0 %v161, 104
    %v481 = vpop.permute.xlu0 %480
    %482 = vrot.lane.b32.xlu0 %v107, 72
    %v483 = vpop.permute.xlu0 %482
    %484 = vrot.lane.b32.xlu0 %v110, 72
    %v485 = vpop.permute.xlu0 %484
    %v486 = vsel %vm168, %v479, 0
    %v488 = vsel %vm168, %v481, 0
    %v490 = vsel %vm168, %v483, 0
    %v492 = vsel %vm168, %v485, 0
    %494 = vmatpush.xpose.msra.mxu0 0.0
    %495 = vmatpush.xpose.msra.mxu0 0.0
    %496 = vmatpush.xpose.msra.mxu0 0.0
    %497 = vmatpush.xpose.msra.mxu0 0.0
    %498 = vmatpush.xpose.msra.mxu0 0.0
    %499 = vmatpush.xpose.msra.mxu0 0.0
    %500 = vmatpush.xpose.msra.mxu0 0.0
    %501 = vmatpush.xpose.msra.mxu0 0.0
    %502 = vmatpush.xpose.msra.mxu0 0.0
    %503 = vmatpush.xpose.msra.mxu0 0.0
    %504 = vmatpush.xpose.msra.mxu0 0.0
    %505 = vmatpush.xpose.msra.mxu0 0.0
    %506 = vmatpush.xpose.msra.mxu0 0.0
    %507 = vmatpush.xpose.msra.mxu0 0.0
    %508 = vmatpush.xpose.msra.mxu0 %v492
    %509 = vmatpush.xpose.msra.mxu0 %v490
    %510 = vmatmul.f32.gmra.mxu0 %v486
    %v511 = vpop.f32.mrf.mxu0
    %v512 = vadd.f32 %v56, %v511
    %513 = vmatmul.f32.gmra.mxu0 %v488
    %v514 = vpop.f32.mrf.mxu0
    %v515 = vadd.f32 %v57, %v514
    %516 = vdwg.mxu0
    %v517 = vsel %vm202, %v512, -inf
    %518 = vmax.xlane.f32.xlu0 %v517
    %v519 = vpop.xlane.xlu0 %518
    %v520 = vsel %vm202, %v515, -inf
    %521 = vmax.xlane.f32.xlu0 %v520
    %v522 = vpop.xlane.xlu0 %521
    %v523 = vsub.f32 %v512, %v519
    %v524 = vsub.f32 %v515, %v522
    %v525 = vmul.f32 %v523, 1.442695
    %v526 = vpow.pop %v525
    %v527 = vmul.f32 %v524, 1.442695
    %v528 = vpow.pop %v527
    %v529 = vsel %vm202, %v526, 0.0
    %530 = vadd.xlane.f32.xlu0 %v529
    %v531 = vpop.xlane.xlu0 %530
    %v532 = vsel %vm202, %v528, 0.0
    %533 = vadd.xlane.f32.xlu0 %v532
    %v534 = vpop.xlane.xlu0 %533
    %v535 = vrcp.pop %v531
    %v536 = vrcp.pop %v534
    %v537 = vmul.f32 %v526, %v535
    %v538 = vmul.f32 %v528, %v536
    %v539 = vadd.f32 %v430, %v537
    %v540 = vadd.f32 %v431, %v538
    %541 = vrot.lane.b32.xlu0 %v155, 104
    %v542 = vpop.permute.xlu0 %541
    %543 = vrot.lane.b32.xlu0 %v158, 104
    %v544 = vpop.permute.xlu0 %543
    %v548 = vsel %vm202, %v537, 0
    %v551 = vsel %vm202, %v538, 0
    %553 = vmatpush.msra.mxu0 0.0
    %554 = vmatpush.msra.mxu0 0.0
    %555 = vmatpush.msra.mxu0 0.0
    %556 = vmatpush.msra.mxu0 0.0
    %557 = vmatpush.msra.mxu0 0.0
    %558 = vmatpush.msra.mxu0 0.0
    %559 = vmatpush.msra.mxu0 0.0
    %560 = vmatpush.msra.mxu0 0.0
    %561 = vmatpush.msra.mxu0 0.0
    %562 = vmatpush.msra.mxu0 0.0
    %563 = vmatpush.msra.mxu0 0.0
    %564 = vmatpush.msra.mxu0 0.0
    %565 = vmatpush.msra.mxu0 0.0
    %566 = vmatpush.msra.mxu0 0.0
    %567 = vmatpush.msra.mxu0 %v544
    %568 = vmatpush.msra.mxu0 %v542
    %569 = vmatmul.f32.gmra.mxu0 %v548
    %v570 = vpop.f32.mrf.mxu0
    %v571 = vadd.f32 0.0, %v570
    %572 = vmatmul.f32.gmra.mxu0 %v551
    %v573 = vpop.f32.mrf.mxu0
    %v574 = vadd.f32 0.0, %v573
    %575 = vdwg.mxu0
    %578 = vrot.lane.b32.xlu0 %v571, 24
    %v579 = vpop.permute.xlu0 %578
    %580 = vrot.lane.b32.xlu0 %v574, 24
    %v581 = vpop.permute.xlu0 %580
    %vm584 = vcmask 261312
    %585 = vst.msk [vmem:[#allocation2] sm:$0xff] %vm584, %v579
    %586 = vst.msk [vmem:[#allocation2 + $0x8] sm:$0xff] %vm584, %v581
    %v587 = vmul.f32 %v539, 0.25
    %v588 = vmul.f32 %v540, 0.25
    %589 = vst.msk [vmem:[%s10] sm:$0xff] %vm202, %v587
    %590 = vst.msk [vmem:[%s10 + $0x8] sm:$0xff] %vm202, %v588
    %v591 = vld [vmem:[#allocation2] sm:$0xff]
    %v592 = vld [vmem:[#allocation2 + $0x8] sm:$0xff]
    %v594 = vperm.slane %v67, 0
    %v597 = vsel %vm82, %v591, 0
    %v600 = vsel %vm82, %v592, 0
    %602 = vmatpush.msra.mxu0 0.0
    %603 = vmatpush.msra.mxu0 0.0
    %604 = vmatpush.msra.mxu0 0.0
    %605 = vmatpush.msra.mxu0 0.0
    %606 = vmatpush.msra.mxu0 0.0
    %607 = vmatpush.msra.mxu0 0.0
    %608 = vmatpush.msra.mxu0 0.0
    %609 = vmatpush.msra.mxu0 0.0
    %610 = vmatpush.msra.mxu0 0.0
    %611 = vmatpush.msra.mxu0 0.0
    %612 = vmatpush.msra.mxu0 0.0
    %613 = vmatpush.msra.mxu0 0.0
    %614 = vmatpush.msra.mxu0 %v66
    %615 = vmatpush.msra.mxu0 %v65
    %616 = vmatpush.msra.mxu0 %v64
    %617 = vmatpush.msra.mxu0 %v63
    %618 = vmatmul.f32.gmra.mxu0 %v597
    %v619 = vpop.f32.mrf.mxu0
    %v620 = vadd.f32 %v594, %v619
    %621 = vmatmul.f32.gmra.mxu0 %v600
    %v622 = vpop.f32.mrf.mxu0
    %v623 = vadd.f32 %v594, %v622
    %624 = vdwg.mxu0
    %v625 = vadd.f32 %v35, %v620
    %v626 = vadd.f32 %v36, %v623
    %v627 = vsel %vm82, %v625, 0.0
    %628 = vadd.xlane.f32.xlu0 %v627
    %v629 = vpop.xlane.xlu0 %628
    %v630 = vsel %vm82, %v626, 0.0
    %631 = vadd.xlane.f32.xlu0 %v630
    %v632 = vpop.xlane.xlu0 %631
    %v633 = vrcp.pop 32.0
    %v634 = vmul.f32 32.0, %v633
    %v635 = vsub.f32 1.0, %v634
    %v636 = vmul.f32 %v633, %v635
    %v637 = vadd.f32 %v633, %v636
    %vm638 = vweird.f32 %v633
    %v639 = vsel %vm638, %v633, %v637
    %v640 = vmul.f32 %v629, %v639
    %v641 = vmul.f32 %v632, %v639
    %v642 = vsub.f32 %v625, %v640
    %v643 = vsub.f32 %v626, %v641
    %v644 = vmul.f32 %v642, %v642
    %v645 = vmul.f32 %v643, %v643
    %v646 = vsel %vm82, %v644, 0.0
    %647 = vadd.xlane.f32.xlu0 %v646
    %v648 = vpop.xlane.xlu0 %647
    %v649 = vsel %vm82, %v645, 0.0
    %650 = vadd.xlane.f32.xlu0 %v649
    %v651 = vpop.xlane.xlu0 %650
    %v652 = vmul.f32 %v648, %v639
    %v653 = vmul.f32 %v651, %v639
    %v654 = vadd.f32 %v652, 1e-05
    %v655 = vadd.f32 %v653, 1e-05
    %v656 = vrsqrt.pop %v654
    %v657 = vmul.f32 %v656, %v654
    %v658 = vmul.f32 %v657, %v656
    %v659 = vmul.f32 0.5, %v658
    %v660 = vsub.f32 1.5, %v659
    %v661 = vmul.f32 %v656, %v660
    %vm662 = vweird.f32 %v654
    %vm663 = vweird.f32 %v656
    %vm664 = vmor %vm662, %vm663
    %v665 = vsel %vm664, %v656, %v661
    %v666 = vrsqrt.pop %v655
    %v667 = vmul.f32 %v666, %v655
    %v668 = vmul.f32 %v667, %v666
    %v669 = vmul.f32 0.5, %v668
    %v670 = vsub.f32 1.5, %v669
    %v671 = vmul.f32 %v666, %v670
    %vm672 = vweird.f32 %v655
    %vm673 = vweird.f32 %v666
    %vm674 = vmor %vm672, %vm673
    %v675 = vsel %vm674, %v666, %v671
    %v676 = vmul.f32 %v642, %v665
    %v677 = vmul.f32 %v643, %v675
    %v678 = vperm.slane %v76, 0
    %v679 = vmul.f32 %v676, %v678
    %v680 = vmul.f32 %v677, %v678
    %v681 = vperm.slane %v76, 1
    %v682 = vadd.f32 %v679, %v681
    %v683 = vadd.f32 %v680, %v681
    %688 = vrot.lane.b32.xlu0 %v63, 96
    %v689 = vpop.permute.xlu0 %688
    %690 = vrot.lane.b32.xlu0 %v64, 96
    %v691 = vpop.permute.xlu0 %690
    %692 = vrot.lane.b32.xlu0 %v65, 96
    %v693 = vpop.permute.xlu0 %692
    %694 = vrot.lane.b32.xlu0 %v66, 96
    %v695 = vpop.permute.xlu0 %694
    %700 = vrot.lane.b32.xlu0 %v594, 96
    %v701 = vpop.permute.xlu0 %700
    %v704 = vsel %vm82, %v682, 0
    %v707 = vsel %vm82, %v683, 0
    %709 = vmatpush.msra.mxu0 0.0
    %710 = vmatpush.msra.mxu0 0.0
    %711 = vmatpush.msra.mxu0 0.0
    %712 = vmatpush.msra.mxu0 0.0
    %713 = vmatpush.msra.mxu0 0.0
    %714 = vmatpush.msra.mxu0 0.0
    %715 = vmatpush.msra.mxu0 0.0
    %716 = vmatpush.msra.mxu0 0.0
    %717 = vmatpush.msra.mxu0 0.0
    %718 = vmatpush.msra.mxu0 0.0
    %719 = vmatpush.msra.mxu0 0.0
    %720 = vmatpush.msra.mxu0 0.0
    %721 = vmatpush.msra.mxu0 %v695
    %722 = vmatpush.msra.mxu0 %v693
    %723 = vmatpush.msra.mxu0 %v691
    %724 = vmatpush.msra.mxu0 %v689
    %725 = vmatmul.f32.gmra.mxu0 %v704
    %v726 = vpop.f32.mrf.mxu0
    %v727 = vadd.f32 %v701, %v726
    %728 = vmatmul.f32.gmra.mxu0 %v707
    %v729 = vpop.f32.mrf.mxu0
    %v730 = vadd.f32 %v701, %v729
    %731 = vdwg.mxu0
    %v732 = vmax.f32 %v727, 0.0
    %v733 = vmax.f32 %v730, 0.0
    %v734 = vperm.slane %v76, 2
    %vm735 = vcmask 523264
    %v737 = vsel %vm735, %v732, 0
    %v740 = vsel %vm735, %v733, 0
    %742 = vmatpush.msra.mxu0 0.0
    %743 = vmatpush.msra.mxu0 0.0
    %744 = vmatpush.msra.mxu0 0.0
    %745 = vmatpush.msra.mxu0 0.0
    %746 = vmatpush.msra.mxu0 0.0
    %747 = vmatpush.msra.mxu0 0.0
    %748 = vmatpush.msra.mxu0 0.0
    %749 = vmatpush.msra.mxu0 0.0
    %750 = vmatpush.msra.mxu0 %v75
    %751 = vmatpush.msra.mxu0 %v74
    %752 = vmatpush.msra.mxu0 %v73
    %753 = vmatpush.msra.mxu0 %v72
    %754 = vmatpush.msra.mxu0 %v71
    %755 = vmatpush.msra.mxu0 %v70
    %756 = vmatpush.msra.mxu0 %v69
    %757 = vmatpush.msra.mxu0 %v68
    %758 = vmatmul.f32.gmra.mxu0 %v737
    %v759 = vpop.f32.mrf.mxu0
    %v760 = vadd.f32 %v734, %v759
    %761 = vmatmul.f32.gmra.mxu0 %v740
    %v762 = vpop.f32.mrf.mxu0
    %v763 = vadd.f32 %v734, %v762
    %764 = vdwg.mxu0
    %v765 = vadd.f32 %v682, %v760
    %v766 = vadd.f32 %v683, %v763
    %v767 = vsel %vm82, %v765, 0.0
    %768 = vadd.xlane.f32.xlu0 %v767
    %v769 = vpop.xlane.xlu0 %768
    %v770 = vsel %vm82, %v766, 0.0
    %771 = vadd.xlane.f32.xlu0 %v770
    %v772 = vpop.xlane.xlu0 %771
    %v773 = vmul.f32 %v769, %v639
    %v774 = vmul.f32 %v772, %v639
    %v775 = vsub.f32 %v765, %v773
    %v776 = vsub.f32 %v766, %v774
    %v777 = vmul.f32 %v775, %v775
    %v778 = vmul.f32 %v776, %v776
    %v779 = vsel %vm82, %v777, 0.0
    %780 = vadd.xlane.f32.xlu0 %v779
    %v781 = vpop.xlane.xlu0 %780
    %v782 = vsel %vm82, %v778, 0.0
    %783 = vadd.xlane.f32.xlu0 %v782
    %v784 = vpop.xlane.xlu0 %783
    %v785 = vmul.f32 %v781, %v639
    %v786 = vmul.f32 %v784, %v639
    %v787 = vadd.f32 %v785, 1e-05
    %v788 = vadd.f32 %v786, 1e-05
    %v789 = vrsqrt.pop %v787
    %v790 = vmul.f32 %v789, %v787
    %v791 = vmul.f32 %v790, %v789
    %v792 = vmul.f32 0.5, %v791
    %v793 = vsub.f32 1.5, %v792
    %v794 = vmul.f32 %v789, %v793
    %vm795 = vweird.f32 %v787
    %vm796 = vweird.f32 %v789
    %vm797 = vmor %vm795, %vm796
    %v798 = vsel %vm797, %v789, %v794
    %v799 = vrsqrt.pop %v788
    %v800 = vmul.f32 %v799, %v788
    %v801 = vmul.f32 %v800, %v799
    %v802 = vmul.f32 0.5, %v801
    %v803 = vsub.f32 1.5, %v802
    %v804 = vmul.f32 %v799, %v803
    %vm805 = vweird.f32 %v788
    %vm806 = vweird.f32 %v799
    %vm807 = vmor %vm805, %vm806
    %v808 = vsel %vm807, %v799, %v804
    %v809 = vmul.f32 %v775, %v798
    %v810 = vmul.f32 %v776, %v808
    %v811 = vperm.slane %v76, 3
    %v812 = vmul.f32 %v809, %v811
    %v813 = vmul.f32 %v810, %v811
    %v814 = vperm.slane %v76, 4
    %v815 = vadd.f32 %v812, %v814
    %v816 = vadd.f32 %v813, %v814
    %s817 = scalar_lea.vmem %s3, 32
    %v818 = vld [vmem:[%s817] sm:$0xff]
    %v819 = vld [vmem:[%s817 + $0x8] sm:$0xff]
    %v820 = vld [vmem:[%s817 + $0x10] sm:$0xff]
    %v821 = vld [vmem:[%s817 + $0x18] sm:$0xff]
    %s822 = scalar_lea.vmem %s4, 1
    %v823 = vld [vmem:[%s822] sm:$0x1]
    %s824 = scalar_lea.vmem %s5, 32
    %v825 = vld [vmem:[%s824] sm:$0xff]
    %v826 = vld [vmem:[%s824 + $0x8] sm:$0xff]
    %v827 = vld [vmem:[%s824 + $0x10] sm:$0xff]
    %v828 = vld [vmem:[%s824 + $0x18] sm:$0xff]
    %s829 = scalar_lea.vmem %s6, 1
    %v830 = vld [vmem:[%s829] sm:$0x1]
    %s831 = scalar_lea.vmem %s7, 64
    %v832 = vld [vmem:[%s831] sm:$0xff]
    %v833 = vld [vmem:[%s831 + $0x8] sm:$0xff]
    %v834 = vld [vmem:[%s831 + $0x10] sm:$0xff]
    %v835 = vld [vmem:[%s831 + $0x18] sm:$0xff]
    %v836 = vld [vmem:[%s831 + $0x20] sm:$0xff]
    %v837 = vld [vmem:[%s831 + $0x28] sm:$0xff]
    %v838 = vld [vmem:[%s831 + $0x30] sm:$0xff]
    %v839 = vld [vmem:[%s831 + $0x38] sm:$0xff]
    %s840 = scalar_lea.vmem %s8, 8
    %v841 = vld [vmem:[%s840] sm:$0x1f]
    %v842 = vadd.f32 %v815, %v37
    %v843 = vadd.f32 %v816, %v38
    %v845 = vperm.slane %v823, 0
    %v848 = vsel %vm82, %v842, 0
    %v851 = vsel %vm82, %v843, 0
    %853 = vmatpush.msra.mxu0 0.0
    %854 = vmatpush.msra.mxu0 0.0
    %855 = vmatpush.msra.mxu0 0.0
    %856 = vmatpush.msra.mxu0 0.0
    %857 = vmatpush.msra.mxu0 0.0
    %858 = vmatpush.msra.mxu0 0.0
    %859 = vmatpush.msra.mxu0 0.0
    %860 = vmatpush.msra.mxu0 0.0
    %861 = vmatpush.msra.mxu0 0.0
    %862 = vmatpush.msra.mxu0 0.0
    %863 = vmatpush.msra.mxu0 0.0
    %864 = vmatpush.msra.mxu0 0.0
    %865 = vmatpush.msra.mxu0 %v821
    %866 = vmatpush.msra.mxu0 %v820
    %867 = vmatpush.msra.mxu0 %v819
    %868 = vmatpush.msra.mxu0 %v818
    %869 = vmatmul.f32.gmra.mxu0 %v848
    %v870 = vpop.f32.mrf.mxu0
    %v871 = vadd.f32 %v845, %v870
    %872 = vmatmul.f32.gmra.mxu0 %v851
    %v873 = vpop.f32.mrf.mxu0
    %v874 = vadd.f32 %v845, %v873
    %875 = vdwg.mxu0
    %880 = vrot.lane.b32.xlu0 %v818, 64
    %v881 = vpop.permute.xlu0 %880
    %882 = vrot.lane.b32.xlu0 %v819, 64
    %v883 = vpop.permute.xlu0 %882
    %884 = vrot.lane.b32.xlu0 %v820, 64
    %v885 = vpop.permute.xlu0 %884
    %886 = vrot.lane.b32.xlu0 %v821, 64
    %v887 = vpop.permute.xlu0 %886
    %892 = vrot.lane.b32.xlu0 %v845, 64
    %v893 = vpop.permute.xlu0 %892
    %v896 = vsel %vm82, %v815, 0
    %v899 = vsel %vm82, %v816, 0
    %901 = vmatpush.msra.mxu0 0.0
    %902 = vmatpush.msra.mxu0 0.0
    %903 = vmatpush.msra.mxu0 0.0
    %904 = vmatpush.msra.mxu0 0.0
    %905 = vmatpush.msra.mxu0 0.0
    %906 = vmatpush.msra.mxu0 0.0
    %907 = vmatpush.msra.mxu0 0.0
    %908 = vmatpush.msra.mxu0 0.0
    %909 = vmatpush.msra.mxu0 0.0
    %910 = vmatpush.msra.mxu0 0.0
    %911 = vmatpush.msra.mxu0 0.0
    %912 = vmatpush.msra.mxu0 0.0
    %913 = vmatpush.msra.mxu0 %v887
    %914 = vmatpush.msra.mxu0 %v885
    %915 = vmatpush.msra.mxu0 %v883
    %916 = vmatpush.msra.mxu0 %v881
    %917 = vmatmul.f32.gmra.mxu0 %v896
    %v918 = vpop.f32.mrf.mxu0
    %v919 = vadd.f32 %v893, %v918
    %920 = vmatmul.f32.gmra.mxu0 %v899
    %v921 = vpop.f32.mrf.mxu0
    %v922 = vadd.f32 %v893, %v921
    %923 = vdwg.mxu0
    %v924 = vmul.f32 %v871, 0.35355338
    %v925 = vmul.f32 %v874, 0.35355338
    %928 = vrot.lane.b32.xlu0 %v871, 96
    %v929 = vpop.permute.xlu0 %928
    %930 = vrot.lane.b32.xlu0 %v874, 96
    %v931 = vpop.permute.xlu0 %930
    %v933 = vsel %vm168, %v924, 0
    %v936 = vsel %vm168, %v925, 0
    %v938 = vsel %vm168, %v929, 0
    %v940 = vsel %vm168, %v931, 0
    %942 = vmatpush.xpose.msra.mxu0 0.0
    %943 = vmatpush.xpose.msra.mxu0 0.0
    %944 = vmatpush.xpose.msra.mxu0 0.0
    %945 = vmatpush.xpose.msra.mxu0 0.0
    %946 = vmatpush.xpose.msra.mxu0 0.0
    %947 = vmatpush.xpose.msra.mxu0 0.0
    %948 = vmatpush.xpose.msra.mxu0 0.0
    %949 = vmatpush.xpose.msra.mxu0 0.0
    %950 = vmatpush.xpose.msra.mxu0 0.0
    %951 = vmatpush.xpose.msra.mxu0 0.0
    %952 = vmatpush.xpose.msra.mxu0 0.0
    %953 = vmatpush.xpose.msra.mxu0 0.0
    %954 = vmatpush.xpose.msra.mxu0 0.0
    %955 = vmatpush.xpose.msra.mxu0 0.0
    %956 = vmatpush.xpose.msra.mxu0 %v940
    %957 = vmatpush.xpose.msra.mxu0 %v938
    %958 = vmatmul.f32.gmra.mxu0 %v933
    %v959 = vpop.f32.mrf.mxu0
    %v960 = vadd.f32 %v56, %v959
    %961 = vmatmul.f32.gmra.mxu0 %v936
    %v962 = vpop.f32.mrf.mxu0
    %v963 = vadd.f32 %v57, %v962
    %964 = vdwg.mxu0
    %v965 = vsel %vm202, %v960, -inf
    %966 = vmax.xlane.f32.xlu0 %v965
    %v967 = vpop.xlane.xlu0 %966
    %v968 = vsel %vm202, %v963, -inf
    %969 = vmax.xlane.f32.xlu0 %v968
    %v970 = vpop.xlane.xlu0 %969
    %v971 = vsub.f32 %v960, %v967
    %v972 = vsub.f32 %v963, %v970
    %v973 = vmul.f32 %v971, 1.442695
    %v974 = vpow.pop %v973
    %v975 = vmul.f32 %v972, 1.442695
    %v976 = vpow.pop %v975
    %v977 = vsel %vm202, %v974, 0.0
    %978 = vadd.xlane.f32.xlu0 %v977
    %v979 = vpop.xlane.xlu0 %978
    %v980 = vsel %vm202, %v976, 0.0
    %981 = vadd.xlane.f32.xlu0 %v980
    %v982 = vpop.xlane.xlu0 %981
    %v983 = vrcp.pop %v979
    %v984 = vrcp.pop %v982
    %v985 = vmul.f32 %v974, %v983
    %v986 = vmul.f32 %v976, %v984
    %v987 = vadd.f32 %v985, 0.0
    %v988 = vadd.f32 %v986, 0.0
    %v990 = vsel %vm202, %v985, 0
    %v993 = vsel %vm202, %v986, 0
    %995 = vmatpush.msra.mxu0 0.0
    %996 = vmatpush.msra.mxu0 0.0
    %997 = vmatpush.msra.mxu0 0.0
    %998 = vmatpush.msra.mxu0 0.0
    %999 = vmatpush.msra.mxu0 0.0
    %1000 = vmatpush.msra.mxu0 0.0
    %1001 = vmatpush.msra.mxu0 0.0
    %1002 = vmatpush.msra.mxu0 0.0
    %1003 = vmatpush.msra.mxu0 0.0
    %1004 = vmatpush.msra.mxu0 0.0
    %1005 = vmatpush.msra.mxu0 0.0
    %1006 = vmatpush.msra.mxu0 0.0
    %1007 = vmatpush.msra.mxu0 0.0
    %1008 = vmatpush.msra.mxu0 0.0
    %1009 = vmatpush.msra.mxu0 %v922
    %1010 = vmatpush.msra.mxu0 %v919
    %1011 = vmatmul.f32.gmra.mxu0 %v990
    %v1012 = vpop.f32.mrf.mxu0
    %v1013 = vadd.f32 0.0, %v1012
    %1014 = vmatmul.f32.gmra.mxu0 %v993
    %v1015 = vpop.f32.mrf.mxu0
    %v1016 = vadd.f32 0.0, %v1015
    %1017 = vdwg.mxu0
    %1018 = vst.msk [vmem:[#allocation2] sm:$0xff] %vm168, %v1013
    %1019 = vst.msk [vmem:[#allocation2 + $0x8] sm:$0xff] %vm168, %v1016
    %1020 = vrot.lane.b32.xlu0 %v924, 120
    %v1021 = vpop.permute.xlu0 %1020
    %1022 = vrot.lane.b32.xlu0 %v925, 120
    %v1023 = vpop.permute.xlu0 %1022
    %1024 = vrot.lane.b32.xlu0 %v871, 88
    %v1025 = vpop.permute.xlu0 %1024
    %1026 = vrot.lane.b32.xlu0 %v874, 88
    %v1027 = vpop.permute.xlu0 %1026
    %v1028 = vsel %vm168, %v1021, 0
    %v1030 = vsel %vm168, %v1023, 0
    %v1032 = vsel %vm168, %v1025, 0
    %v1034 = vsel %vm168, %v1027, 0
    %1036 = vmatpush.xpose.msra.mxu0 0.0
    %1037 = vmatpush.xpose.msra.mxu0 0.0
    %1038 = vmatpush.xpose.msra.mxu0 0.0
    %1039 = vmatpush.xpose.msra.mxu0 0.0
    %1040 = vmatpush.xpose.msra.mxu0 0.0
    %1041 = vmatpush.xpose.msra.mxu0 0.0
    %1042 = vmatpush.xpose.msra.mxu0 0.0
    %1043 = vmatpush.xpose.msra.mxu0 0.0
    %1044 = vmatpush.xpose.msra.mxu0 0.0
    %1045 = vmatpush.xpose.msra.mxu0 0.0
    %1046 = vmatpush.xpose.msra.mxu0 0.0
    %1047 = vmatpush.xpose.msra.mxu0 0.0
    %1048 = vmatpush.xpose.msra.mxu0 0.0
    %1049 = vmatpush.xpose.msra.mxu0 0.0
    %1050 = vmatpush.xpose.msra.mxu0 %v1034
    %1051 = vmatpush.xpose.msra.mxu0 %v1032
    %1052 = vmatmul.f32.gmra.mxu0 %v1028
    %v1053 = vpop.f32.mrf.mxu0
    %v1054 = vadd.f32 %v56, %v1053
    %1055 = vmatmul.f32.gmra.mxu0 %v1030
    %v1056 = vpop.f32.mrf.mxu0
    %v1057 = vadd.f32 %v57, %v1056
    %1058 = vdwg.mxu0
    %v1059 = vsel %vm202, %v1054, -inf
    %1060 = vmax.xlane.f32.xlu0 %v1059
    %v1061 = vpop.xlane.xlu0 %1060
    %v1062 = vsel %vm202, %v1057, -inf
    %1063 = vmax.xlane.f32.xlu0 %v1062
    %v1064 = vpop.xlane.xlu0 %1063
    %v1065 = vsub.f32 %v1054, %v1061
    %v1066 = vsub.f32 %v1057, %v1064
    %v1067 = vmul.f32 %v1065, 1.442695
    %v1068 = vpow.pop %v1067
    %v1069 = vmul.f32 %v1066, 1.442695
    %v1070 = vpow.pop %v1069
    %v1071 = vsel %vm202, %v1068, 0.0
    %1072 = vadd.xlane.f32.xlu0 %v1071
    %v1073 = vpop.xlane.xlu0 %1072
    %v1074 = vsel %vm202, %v1070, 0.0
    %1075 = vadd.xlane.f32.xlu0 %v1074
    %v1076 = vpop.xlane.xlu0 %1075
    %v1077 = vrcp.pop %v1073
    %v1078 = vrcp.pop %v1076
    %v1079 = vmul.f32 %v1068, %v1077
    %v1080 = vmul.f32 %v1070, %v1078
    %v1081 = vadd.f32 %v987, %v1079
    %v1082 = vadd.f32 %v988, %v1080
    %1085 = vrot.lane.b32.xlu0 %v919, 120
    %v1086 = vpop.permute.xlu0 %1085
    %1087 = vrot.lane.b32.xlu0 %v922, 120
    %v1088 = vpop.permute.xlu0 %1087
    %v1092 = vsel %vm202, %v1079, 0
    %v1095 = vsel %vm202, %v1080, 0
    %1097 = vmatpush.msra.mxu0 0.0
    %1098 = vmatpush.msra.mxu0 0.0
    %1099 = vmatpush.msra.mxu0 0.0
    %1100 = vmatpush.msra.mxu0 0.0
    %1101 = vmatpush.msra.mxu0 0.0
    %1102 = vmatpush.msra.mxu0 0.0
    %1103 = vmatpush.msra.mxu0 0.0
    %1104 = vmatpush.msra.mxu0 0.0
    %1105 = vmatpush.msra.mxu0 0.0
    %1106 = vmatpush.msra.mxu0 0.0
    %1107 = vmatpush.msra.mxu0 0.0
    %1108 = vmatpush.msra.mxu0 0.0
    %1109 = vmatpush.msra.mxu0 0.0
    %1110 = vmatpush.msra.mxu0 0.0
    %1111 = vmatpush.msra.mxu0 %v1088
    %1112 = vmatpush.msra.mxu0 %v1086
    %1113 = vmatmul.f32.gmra.mxu0 %v1092
    %v1114 = vpop.f32.mrf.mxu0
    %v1115 = vadd.f32 0.0, %v1114
    %1116 = vmatmul.f32.gmra.mxu0 %v1095
    %v1117 = vpop.f32.mrf.mxu0
    %v1118 = vadd.f32 0.0, %v1117
    %1119 = vdwg.mxu0
    %1122 = vrot.lane.b32.xlu0 %v1115, 8
    %v1123 = vpop.permute.xlu0 %1122
    %1124 = vrot.lane.b32.xlu0 %v1118, 8
    %v1125 = vpop.permute.xlu0 %1124
    %1128 = vst.msk [vmem:[#allocation2] sm:$0xff] %vm366, %v1123
    %1129 = vst.msk [vmem:[#allocation2 + $0x8] sm:$0xff] %vm366, %v1125
    %1130 = vrot.lane.b32.xlu0 %v924, 112
    %v1131 = vpop.permute.xlu0 %1130
    %1132 = vrot.lane.b32.xlu0 %v925, 112
    %v1133 = vpop.permute.xlu0 %1132
    %1134 = vrot.lane.b32.xlu0 %v871, 80
    %v1135 = vpop.permute.xlu0 %1134
    %1136 = vrot.lane.b32.xlu0 %v874, 80
    %v1137 = vpop.permute.xlu0 %1136
    %v1138 = vsel %vm168, %v1131, 0
    %v1140 = vsel %vm168, %v1133, 0
    %v1142 = vsel %vm168, %v1135, 0
    %v1144 = vsel %vm168, %v1137, 0
    %1146 = vmatpush.xpose.msra.mxu0 0.0
    %1147 = vmatpush.xpose.msra.mxu0 0.0
    %1148 = vmatpush.xpose.msra.mxu0 0.0
    %1149 = vmatpush.xpose.msra.mxu0 0.0
    %1150 = vmatpush.xpose.msra.mxu0 0.0
    %1151 = vmatpush.xpose.msra.mxu0 0.0
    %1152 = vmatpush.xpose.msra.mxu0 0.0
    %1153 = vmatpush.xpose.msra.mxu0 0.0
    %1154 = vmatpush.xpose.msra.mxu0 0.0
    %1155 = vmatpush.xpose.msra.mxu0 0.0
    %1156 = vmatpush.xpose.msra.mxu0 0.0
    %1157 = vmatpush.xpose.msra.mxu0 0.0
    %1158 = vmatpush.xpose.msra.mxu0 0.0
    %1159 = vmatpush.xpose.msra.mxu0 0.0
    %1160 = vmatpush.xpose.msra.mxu0 %v1144
    %1161 = vmatpush.xpose.msra.mxu0 %v1142
    %1162 = vmatmul.f32.gmra.mxu0 %v1138
    %v1163 = vpop.f32.mrf.mxu0
    %v1164 = vadd.f32 %v56, %v1163
    %1165 = vmatmul.f32.gmra.mxu0 %v1140
    %v1166 = vpop.f32.mrf.mxu0
    %v1167 = vadd.f32 %v57, %v1166
    %1168 = vdwg.mxu0
    %v1169 = vsel %vm202, %v1164, -inf
    %1170 = vmax.xlane.f32.xlu0 %v1169
    %v1171 = vpop.xlane.xlu0 %1170
    %v1172 = vsel %vm202, %v1167, -inf
    %1173 = vmax.xlane.f32.xlu0 %v1172
    %v1174 = vpop.xlane.xlu0 %1173
    %v1175 = vsub.f32 %v1164, %v1171
    %v1176 = vsub.f32 %v1167, %v1174
    %v1177 = vmul.f32 %v1175, 1.442695
    %v1178 = vpow.pop %v1177
    %v1179 = vmul.f32 %v1176, 1.442695
    %v1180 = vpow.pop %v1179
    %v1181 = vsel %vm202, %v1178, 0.0
    %1182 = vadd.xlane.f32.xlu0 %v1181
    %v1183 = vpop.xlane.xlu0 %1182
    %v1184 = vsel %vm202, %v1180, 0.0
    %1185 = vadd.xlane.f32.xlu0 %v1184
    %v1186 = vpop.xlane.xlu0 %1185
    %v1187 = vrcp.pop %v1183
    %v1188 = vrcp.pop %v1186
    %v1189 = vmul.f32 %v1178, %v1187
    %v1190 = vmul.f32 %v1180, %v1188
    %v1191 = vadd.f32 %v1081, %v1189
    %v1192 = vadd.f32 %v1082, %v1190
    %1193 = vrot.lane.b32.xlu0 %v919, 112
    %v1194 = vpop.permute.xlu0 %1193
    %1195 = vrot.lane.b32.xlu0 %v922, 112
    %v1196 = vpop.permute.xlu0 %1195
    %v1200 = vsel %vm202, %v1189, 0
    %v1203 = vsel %vm202, %v1190, 0
    %1205 = vmatpush.msra.mxu0 0.0
    %1206 = vmatpush.msra.mxu0 0.0
    %1207 = vmatpush.msra.mxu0 0.0
    %1208 = vmatpush.msra.mxu0 0.0
    %1209 = vmatpush.msra.mxu0 0.0
    %1210 = vmatpush.msra.mxu0 0.0
    %1211 = vmatpush.msra.mxu0 0.0
    %1212 = vmatpush.msra.mxu0 0.0
    %1213 = vmatpush.msra.mxu0 0.0
    %1214 = vmatpush.msra.mxu0 0.0
    %1215 = vmatpush.msra.mxu0 0.0
    %1216 = vmatpush.msra.mxu0 0.0
    %1217 = vmatpush.msra.mxu0 0.0
    %1218 = vmatpush.msra.mxu0 0.0
    %1219 = vmatpush.msra.mxu0 %v1196
    %1220 = vmatpush.msra.mxu0 %v1194
    %1221 = vmatmul.f32.gmra.mxu0 %v1200
    %v1222 = vpop.f32.mrf.mxu0
    %v1223 = vadd.f32 0.0, %v1222
    %1224 = vmatmul.f32.gmra.mxu0 %v1203
    %v1225 = vpop.f32.mrf.mxu0
    %v1226 = vadd.f32 0.0, %v1225
    %1227 = vdwg.mxu0
    %1230 = vrot.lane.b32.xlu0 %v1223, 16
    %v1231 = vpop.permute.xlu0 %1230
    %1232 = vrot.lane.b32.xlu0 %v1226, 16
    %v1233 = vpop.permute.xlu0 %1232
    %1236 = vst.msk [vmem:[#allocation2] sm:$0xff] %vm475, %v1231
    %1237 = vst.msk [vmem:[#allocation2 + $0x8] sm:$0xff] %vm475, %v1233
    %1238 = vrot.lane.b32.xlu0 %v924, 104
    %v1239 = vpop.permute.xlu0 %1238
    %1240 = vrot.lane.b32.xlu0 %v925, 104
    %v1241 = vpop.permute.xlu0 %1240
    %1242 = vrot.lane.b32.xlu0 %v871, 72
    %v1243 = vpop.permute.xlu0 %1242
    %1244 = vrot.lane.b32.xlu0 %v874, 72
    %v1245 = vpop.permute.xlu0 %1244
    %v1246 = vsel %vm168, %v1239, 0
    %v1248 = vsel %vm168, %v1241, 0
    %v1250 = vsel %vm168, %v1243, 0
    %v1252 = vsel %vm168, %v1245, 0
    %1254 = vmatpush.xpose.msra.mxu0 0.0
    %1255 = vmatpush.xpose.msra.mxu0 0.0
    %1256 = vmatpush.xpose.msra.mxu0 0.0
    %1257 = vmatpush.xpose.msra.mxu0 0.0
    %1258 = vmatpush.xpose.msra.mxu0 0.0
    %1259 = vmatpush.xpose.msra.mxu0 0.0
    %1260 = vmatpush.xpose.msra.mxu0 0.0
    %1261 = vmatpush.xpose.msra.mxu0 0.0
    %1262 = vmatpush.xpose.msra.mxu0 0.0
    %1263 = vmatpush.xpose.msra.mxu0 0.0
    %1264 = vmatpush.xpose.msra.mxu0 0.0
    %1265 = vmatpush.xpose.msra.mxu0 0.0
    %1266 = vmatpush.xpose.msra.mxu0 0.0
    %1267 = vmatpush.xpose.msra.mxu0 0.0
    %1268 = vmatpush.xpose.msra.mxu0 %v1252
    %1269 = vmatpush.xpose.msra.mxu0 %v1250
    %1270 = vmatmul.f32.gmra.mxu0 %v1246
    %v1271 = vpop.f32.mrf.mxu0
    %v1272 = vadd.f32 %v56, %v1271
    %1273 = vmatmul.f32.gmra.mxu0 %v1248
    %v1274 = vpop.f32.mrf.mxu0
    %v1275 = vadd.f32 %v57, %v1274
    %1276 = vdwg.mxu0
    %v1277 = vsel %vm202, %v1272, -inf
    %1278 = vmax.xlane.f32.xlu0 %v1277
    %v1279 = vpop.xlane.xlu0 %1278
    %v1280 = vsel %vm202, %v1275, -inf
    %1281 = vmax.xlane.f32.xlu0 %v1280
    %v1282 = vpop.xlane.xlu0 %1281
    %v1283 = vsub.f32 %v1272, %v1279
    %v1284 = vsub.f32 %v1275, %v1282
    %v1285 = vmul.f32 %v1283, 1.442695
    %v1286 = vpow.pop %v1285
    %v1287 = vmul.f32 %v1284, 1.442695
    %v1288 = vpow.pop %v1287
    %v1289 = vsel %vm202, %v1286, 0.0
    %1290 = vadd.xlane.f32.xlu0 %v1289
    %v1291 = vpop.xlane.xlu0 %1290
    %v1292 = vsel %vm202, %v1288, 0.0
    %1293 = vadd.xlane.f32.xlu0 %v1292
    %v1294 = vpop.xlane.xlu0 %1293
    %v1295 = vrcp.pop %v1291
    %v1296 = vrcp.pop %v1294
    %v1297 = vmul.f32 %v1286, %v1295
    %v1298 = vmul.f32 %v1288, %v1296
    %v1299 = vadd.f32 %v1191, %v1297
    %v1300 = vadd.f32 %v1192, %v1298
    %1301 = vrot.lane.b32.xlu0 %v919, 104
    %v1302 = vpop.permute.xlu0 %1301
    %1303 = vrot.lane.b32.xlu0 %v922, 104
    %v1304 = vpop.permute.xlu0 %1303
    %v1308 = vsel %vm202, %v1297, 0
    %v1311 = vsel %vm202, %v1298, 0
    %1313 = vmatpush.msra.mxu0 0.0
    %1314 = vmatpush.msra.mxu0 0.0
    %1315 = vmatpush.msra.mxu0 0.0
    %1316 = vmatpush.msra.mxu0 0.0
    %1317 = vmatpush.msra.mxu0 0.0
    %1318 = vmatpush.msra.mxu0 0.0
    %1319 = vmatpush.msra.mxu0 0.0
    %1320 = vmatpush.msra.mxu0 0.0
    %1321 = vmatpush.msra.mxu0 0.0
    %1322 = vmatpush.msra.mxu0 0.0
    %1323 = vmatpush.msra.mxu0 0.0
    %1324 = vmatpush.msra.mxu0 0.0
    %1325 = vmatpush.msra.mxu0 0.0
    %1326 = vmatpush.msra.mxu0 0.0
    %1327 = vmatpush.msra.mxu0 %v1304
    %1328 = vmatpush.msra.mxu0 %v1302
    %1329 = vmatmul.f32.gmra.mxu0 %v1308
    %v1330 = vpop.f32.mrf.mxu0
    %v1331 = vadd.f32 0.0, %v1330
    %1332 = vmatmul.f32.gmra.mxu0 %v1311
    %v1333 = vpop.f32.mrf.mxu0
    %v1334 = vadd.f32 0.0, %v1333
    %1335 = vdwg.mxu0
    %1338 = vrot.lane.b32.xlu0 %v1331, 24
    %v1339 = vpop.permute.xlu0 %1338
    %1340 = vrot.lane.b32.xlu0 %v1334, 24
    %v1341 = vpop.permute.xlu0 %1340
    %1344 = vst.msk [vmem:[#allocation2] sm:$0xff] %vm584, %v1339
    %1345 = vst.msk [vmem:[#allocation2 + $0x8] sm:$0xff] %vm584, %v1341
    %v1346 = vmul.f32 %v1299, 0.25
    %v1347 = vmul.f32 %v1300, 0.25
    %s1348 = scalar_lea.vmem %s10, 16
    %1349 = vst.msk [vmem:[%s1348] sm:$0xff] %vm202, %v1346
    %1350 = vst.msk [vmem:[%s1348 + $0x8] sm:$0xff] %vm202, %v1347
    %v1351 = vld [vmem:[#allocation2] sm:$0xff]
    %v1352 = vld [vmem:[#allocation2 + $0x8] sm:$0xff]
    %v1354 = vperm.slane %v830, 0
    %v1357 = vsel %vm82, %v1351, 0
    %v1360 = vsel %vm82, %v1352, 0
    %1362 = vmatpush.msra.mxu0 0.0
    %1363 = vmatpush.msra.mxu0 0.0
    %1364 = vmatpush.msra.mxu0 0.0
    %1365 = vmatpush.msra.mxu0 0.0
    %1366 = vmatpush.msra.mxu0 0.0
    %1367 = vmatpush.msra.mxu0 0.0
    %1368 = vmatpush.msra.mxu0 0.0
    %1369 = vmatpush.msra.mxu0 0.0
    %1370 = vmatpush.msra.mxu0 0.0
    %1371 = vmatpush.msra.mxu0 0.0
    %1372 = vmatpush.msra.mxu0 0.0
    %1373 = vmatpush.msra.mxu0 0.0
    %1374 = vmatpush.msra.mxu0 %v828
    %1375 = vmatpush.msra.mxu0 %v827
    %1376 = vmatpush.msra.mxu0 %v826
    %1377 = vmatpush.msra.mxu0 %v825
    %1378 = vmatmul.f32.gmra.mxu0 %v1357
    %v1379 = vpop.f32.mrf.mxu0
    %v1380 = vadd.f32 %v1354, %v1379
    %1381 = vmatmul.f32.gmra.mxu0 %v1360
    %v1382 = vpop.f32.mrf.mxu0
    %v1383 = vadd.f32 %v1354, %v1382
    %1384 = vdwg.mxu0
    %v1385 = vadd.f32 %v815, %v1380
    %v1386 = vadd.f32 %v816, %v1383
    %v1387 = vsel %vm82, %v1385, 0.0
    %1388 = vadd.xlane.f32.xlu0 %v1387
    %v1389 = vpop.xlane.xlu0 %1388
    %v1390 = vsel %vm82, %v1386, 0.0
    %1391 = vadd.xlane.f32.xlu0 %v1390
    %v1392 = vpop.xlane.xlu0 %1391
    %v1393 = vmul.f32 %v1389, %v639
    %v1394 = vmul.f32 %v1392, %v639
    %v1395 = vsub.f32 %v1385, %v1393
    %v1396 = vsub.f32 %v1386, %v1394
    %v1397 = vmul.f32 %v1395, %v1395
    %v1398 = vmul.f32 %v1396, %v1396
    %v1399 = vsel %vm82, %v1397, 0.0
    %1400 = vadd.xlane.f32.xlu0 %v1399
    %v1401 = vpop.xlane.xlu0 %1400
    %v1402 = vsel %vm82, %v1398, 0.0
    %1403 = vadd.xlane.f32.xlu0 %v1402
    %v1404 = vpop.xlane.xlu0 %1403
    %v1405 = vmul.f32 %v1401, %v639
    %v1406 = vmul.f32 %v1404, %v639
    %v1407 = vadd.f32 %v1405, 1e-05
    %v1408 = vadd.f32 %v1406, 1e-05
    %v1409 = vrsqrt.pop %v1407
    %v1410 = vmul.f32 %v1409, %v1407
    %v1411 = vmul.f32 %v1410, %v1409
    %v1412 = vmul.f32 0.5, %v1411
    %v1413 = vsub.f32 1.5, %v1412
    %v1414 = vmul.f32 %v1409, %v1413
    %vm1415 = vweird.f32 %v1407
    %vm1416 = vweird.f32 %v1409
    %vm1417 = vmor %vm1415, %vm1416
    %v1418 = vsel %vm1417, %v1409, %v1414
    %v1419 = vrsqrt.pop %v1408
    %v1420 = vmul.f32 %v1419, %v1408
    %v1421 = vmul.f32 %v1420, %v1419
    %v1422 = vmul.f32 0.5, %v1421
    %v1423 = vsub.f32 1.5, %v1422
    %v1424 = vmul.f32 %v1419, %v1423
    %vm1425 = vweird.f32 %v1408
    %vm1426 = vweird.f32 %v1419
    %vm1427 = vmor %vm1425, %vm1426
    %v1428 = vsel %vm1427, %v1419, %v1424
    %v1429 = vmul.f32 %v1395, %v1418
    %v1430 = vmul.f32 %v1396, %v1428
    %v1431 = vperm.slane %v841, 0
    %v1432 = vmul.f32 %v1429, %v1431
    %v1433 = vmul.f32 %v1430, %v1431
    %v1434 = vperm.slane %v841, 1
    %v1435 = vadd.f32 %v1432, %v1434
    %v1436 = vadd.f32 %v1433, %v1434
    %1441 = vrot.lane.b32.xlu0 %v825, 96
    %v1442 = vpop.permute.xlu0 %1441
    %1443 = vrot.lane.b32.xlu0 %v826, 96
    %v1444 = vpop.permute.xlu0 %1443
    %1445 = vrot.lane.b32.xlu0 %v827, 96
    %v1446 = vpop.permute.xlu0 %1445
    %1447 = vrot.lane.b32.xlu0 %v828, 96
    %v1448 = vpop.permute.xlu0 %1447
    %1453 = vrot.lane.b32.xlu0 %v1354, 96
    %v1454 = vpop.permute.xlu0 %1453
    %v1457 = vsel %vm82, %v1435, 0
    %v1460 = vsel %vm82, %v1436, 0
    %1462 = vmatpush.msra.mxu0 0.0
    %1463 = vmatpush.msra.mxu0 0.0
    %1464 = vmatpush.msra.mxu0 0.0
    %1465 = vmatpush.msra.mxu0 0.0
    %1466 = vmatpush.msra.mxu0 0.0
    %1467 = vmatpush.msra.mxu0 0.0
    %1468 = vmatpush.msra.mxu0 0.0
    %1469 = vmatpush.msra.mxu0 0.0
    %1470 = vmatpush.msra.mxu0 0.0
    %1471 = vmatpush.msra.mxu0 0.0
    %1472 = vmatpush.msra.mxu0 0.0
    %1473 = vmatpush.msra.mxu0 0.0
    %1474 = vmatpush.msra.mxu0 %v1448
    %1475 = vmatpush.msra.mxu0 %v1446
    %1476 = vmatpush.msra.mxu0 %v1444
    %1477 = vmatpush.msra.mxu0 %v1442
    %1478 = vmatmul.f32.gmra.mxu0 %v1457
    %v1479 = vpop.f32.mrf.mxu0
    %v1480 = vadd.f32 %v1454, %v1479
    %1481 = vmatmul.f32.gmra.mxu0 %v1460
    %v1482 = vpop.f32.mrf.mxu0
    %v1483 = vadd.f32 %v1454, %v1482
    %1484 = vdwg.mxu0
    %v1485 = vmax.f32 %v1480, 0.0
    %v1486 = vmax.f32 %v1483, 0.0
    %v1487 = vperm.slane %v841, 2
    %v1489 = vsel %vm735, %v1485, 0
    %v1492 = vsel %vm735, %v1486, 0
    %1494 = vmatpush.msra.mxu0 0.0
    %1495 = vmatpush.msra.mxu0 0.0
    %1496 = vmatpush.msra.mxu0 0.0
    %1497 = vmatpush.msra.mxu0 0.0
    %1498 = vmatpush.msra.mxu0 0.0
    %1499 = vmatpush.msra.mxu0 0.0
    %1500 = vmatpush.msra.mxu0 0.0
    %1501 = vmatpush.msra.mxu0 0.0
    %1502 = vmatpush.msra.mxu0 %v839
    %1503 = vmatpush.msra.mxu0 %v838
    %1504 = vmatpush.msra.mxu0 %v837
    %1505 = vmatpush.msra.mxu0 %v836
    %1506 = vmatpush.msra.mxu0 %v835
    %1507 = vmatpush.msra.mxu0 %v834
    %1508 = vmatpush.msra.mxu0 %v833
    %1509 = vmatpush.msra.mxu0 %v832
    %1510 = vmatmul.f32.gmra.mxu0 %v1489
    %v1511 = vpop.f32.mrf.mxu0
    %v1512 = vadd.f32 %v1487, %v1511
    %1513 = vmatmul.f32.gmra.mxu0 %v1492
    %v1514 = vpop.f32.mrf.mxu0
    %v1515 = vadd.f32 %v1487, %v1514
    %1516 = vdwg.mxu0
    %v1517 = vadd.f32 %v1435, %v1512
    %v1518 = vadd.f32 %v1436, %v1515
    %v1519 = vsel %vm82, %v1517, 0.0
    %1520 = vadd.xlane.f32.xlu0 %v1519
    %v1521 = vpop.xlane.xlu0 %1520
    %v1522 = vsel %vm82, %v1518, 0.0
    %1523 = vadd.xlane.f32.xlu0 %v1522
    %v1524 = vpop.xlane.xlu0 %1523
    %v1525 = vmul.f32 %v1521, %v639
    %v1526 = vmul.f32 %v1524, %v639
    %v1527 = vsub.f32 %v1517, %v1525
    %v1528 = vsub.f32 %v1518, %v1526
    %v1529 = vmul.f32 %v1527, %v1527
    %v1530 = vmul.f32 %v1528, %v1528
    %v1531 = vsel %vm82, %v1529, 0.0
    %1532 = vadd.xlane.f32.xlu0 %v1531
    %v1533 = vpop.xlane.xlu0 %1532
    %v1534 = vsel %vm82, %v1530, 0.0
    %1535 = vadd.xlane.f32.xlu0 %v1534
    %v1536 = vpop.xlane.xlu0 %1535
    %v1537 = vmul.f32 %v1533, %v639
    %v1538 = vmul.f32 %v1536, %v639
    %v1539 = vadd.f32 %v1537, 1e-05
    %v1540 = vadd.f32 %v1538, 1e-05
    %v1541 = vrsqrt.pop %v1539
    %v1542 = vmul.f32 %v1541, %v1539
    %v1543 = vmul.f32 %v1542, %v1541
    %v1544 = vmul.f32 0.5, %v1543
    %v1545 = vsub.f32 1.5, %v1544
    %v1546 = vmul.f32 %v1541, %v1545
    %vm1547 = vweird.f32 %v1539
    %vm1548 = vweird.f32 %v1541
    %vm1549 = vmor %vm1547, %vm1548
    %v1550 = vsel %vm1549, %v1541, %v1546
    %v1551 = vrsqrt.pop %v1540
    %v1552 = vmul.f32 %v1551, %v1540
    %v1553 = vmul.f32 %v1552, %v1551
    %v1554 = vmul.f32 0.5, %v1553
    %v1555 = vsub.f32 1.5, %v1554
    %v1556 = vmul.f32 %v1551, %v1555
    %vm1557 = vweird.f32 %v1540
    %vm1558 = vweird.f32 %v1551
    %vm1559 = vmor %vm1557, %vm1558
    %v1560 = vsel %vm1559, %v1551, %v1556
    %v1561 = vmul.f32 %v1527, %v1550
    %v1562 = vmul.f32 %v1528, %v1560
    %v1563 = vperm.slane %v841, 3
    %v1564 = vmul.f32 %v1561, %v1563
    %v1565 = vmul.f32 %v1562, %v1563
    %v1566 = vperm.slane %v841, 4
    %v1567 = vadd.f32 %v1564, %v1566
    %v1568 = vadd.f32 %v1565, %v1566
    %1569 = vst.msk [vmem:[#allocation3] sm:$0xff] %vm82, %v1567
    %1570 = vst.msk [vmem:[#allocation3 + $0x8] sm:$0xff] %vm82, %v1568
    // Predicated region
    $region38: #{transformer_decoder.1} parent=1 // pred_check
      _
    $region39: #{transformer_decoder.1} parent=1 // pred_check_branch
      %1572 = sbr.rel (0) target = $region41
    $region40: #{transformer_decoder.1} parent=1 // pred_region
      %1574 = vsyncadd [#allocation4], 0
      %s1575 = sshll.u32 [#allocation3], 4
      %s1576 = int_to_ptr.vmem [resolvable:$true] %s1575
      %s1577 = sshll.u32 %s9, 4
      %s1578 = int_to_ptr.hbm [resolvable:$true] %s1577
      %1583 = dma.vmem_to_hbm [thread:$0]  %s1576, 256, %s1578, [#allocation4], 128, 128, 8
    $region41: #{transformer_decoder.1} parent=1 // pred_fallthru
      _
    // Predicated region
    $region42: #{transformer_decoder.1} parent=1 // pred_check
      _
    $region43: #{transformer_decoder.1} parent=1 // pred_check_branch
      %1585 = sbr.rel (0) target = $region45
    $region44: #{transformer_decoder.1} parent=1 // pred_region
      _
    $region45: #{transformer_decoder.1} parent=1 // pred_fallthru
      _
    // Predicated region
    $region46: #{transformer_decoder.1} parent=1 // pred_check
      _
    $region47: #{transformer_decoder.1} parent=1 // pred_check_branch
      %1587 = sbr.rel (0) target = $region49
    $region48: #{transformer_decoder.1} parent=1 // pred_region
      %1589 = dma.done [#allocation4], 256
    $region49: #{transformer_decoder.1} parent=1 // pred_fallthru
      _
    // Predicated region
    $region50: #{transformer_decoder.1} parent=1 // pred_check
      _
    $region51: #{transformer_decoder.1} parent=1 // pred_check_branch
      %1591 = sbr.rel (0) target = $region53
    $region52: #{transformer_decoder.1} parent=1 // pred_region
      _
    $region53: #{transformer_decoder.1} parent=1 // pred_fallthru
      _
    %1592 = vsyncpa [#allocation4], 1

</llo_original>
